<compile_context>
chip_gen: v6e
topology: v6e:2x2x1
jax: 0.10.0
libtpu: 0.0.40
codegen_flags: <defaults>
</compile_context>

<pallas_src>
import jax
import jax.numpy as jnp
from jax.experimental import pallas as pl
from jax.experimental.pallas import tpu as pltpu


# ----------------------------------------------------------------------------
# Pallas kernel: wavefront multi-layer LSTM recurrence + FC head (no grid)
# ----------------------------------------------------------------------------
def _make_kernel(n_layers: int, hidden_dim: int, seq_len: int, batch_pad: int):
    NL, H, T, BP = n_layers, hidden_dim, seq_len, batch_pad
    HN = NL * H          # packed hidden width  [ h_0 | h_1 | ... ]
    G = 4 * HN           # packed gate width    [ I | F | O | G ], each HN wide

    def sigmoid(z):
        # exp on the EUP + approx reciprocal on the EUP: divide off the VALU.
        return pl.reciprocal(1.0 + jnp.exp(-z), approx=True)

    def kernel(x_ref, wih0_ref, bias_ref, wf_ref, fcw_ref, fcb_ref,
               topw_ref, topb_ref, out_ref):
        # Hoisted layer-0 input projection with ALL layers' biases folded in.
        # Columns of layers >= 1 in wih0_aug are zero, so this also pre-builds
        # the full per-step additive gate slab (off the serial critical path).
        xproj = (jnp.dot(x_ref[...], wih0_ref[...],
                         preferred_element_type=jnp.float32)
                 + bias_ref[...])                       # (T*BP, G)

        wf = wf_ref[...]                                # (HN, G) fused weight
        bias_row = bias_ref[...]                        # (1, G)

        h = jnp.zeros((BP, HN), jnp.float32)            # packed hidden state
        c = jnp.zeros((BP, HN), jnp.float32)            # packed cell state

        # Wavefront: step s computes layer l's LSTM cell at time t = s - l.
        # All layers at step s depend only on the packed state after step s-1,
        # so one fused matmul per step replaces NL dependent matmuls.
        for s in range(T + NL - 1):
            addend = xproj[s * BP:(s + 1) * BP, :] if s < T else bias_row
            gates = addend + jnp.dot(h, wf, preferred_element_type=jnp.float32)
            sig = sigmoid(gates[:, 0:3 * HN])           # one lane-dense slab
            i = sig[:, 0:HN]
            f = sig[:, HN:2 * HN]
            o = sig[:, 2 * HN:3 * HN]
            g = jnp.tanh(gates[:, 3 * HN:4 * HN])
            c_new = f * c + i * g
            h_new = o * jnp.tanh(c_new)
            if s < NL - 1:
                # Layers l > s have not reached their first timestep yet; keep
                # their state at the (zero) initial value.  Static constant
                # mask -> a constant vsel, only on the first NL-1 edge steps.
                keep = (s + 1) * H
                mask = jnp.concatenate(
                    [jnp.ones((1, keep), jnp.float32),
                     jnp.zeros((1, HN - keep), jnp.float32)], axis=1)
                h = h_new * mask
                c = c_new * mask
            else:
                h, c = h_new, c_new

        # ---- FC head (dropout == identity at inference) ----
        h_last = h[:, (NL - 1) * H:NL * H]       # last layer, last timestep
        hid = jnp.maximum(
            jnp.dot(h_last, fcw_ref[...], preferred_element_type=jnp.float32)
            + fcb_ref[...], 0.0)
        # (BP,F)@(F,1): VPU multiply + row reduction (avoid N=1 MXU matmul).
        out_ref[...] = (jnp.sum(hid * topw_ref[...], axis=-1, keepdims=True)
                        + topb_ref[...])

    return kernel


# ----------------------------------------------------------------------------
# Wrapper: pack weights into the wavefront layout and call the kernel
# ----------------------------------------------------------------------------
def ud_lstm_ia_forward(x_bct, params, n_layers, hidden_dim, fc_hidden_dim):
    """x_bct: (B, input_dim, seq) float32.  Returns (B, 1)."""
    B, D, T = x_bct.shape
    H, NL, Fh = hidden_dim, n_layers, fc_hidden_dim
    HN = NL * H
    G = 4 * HN
    BP = ((B + 7) // 8) * 8            # pad batch to whole sublane groups

    # permute(0,2,1) -> (B,T,D); time-major; pad batch; flatten to (T*BP, D).
    x_tbd = jnp.transpose(x_bct, (2, 0, 1)).astype(jnp.float32)    # (T, B, D)
    x_pad = jnp.zeros((T, BP, D), jnp.float32).at[:, :B, :].set(x_tbd)
    x_flat = x_pad.reshape(T * BP, D)

    def gate_blocks(w_t):
        # PyTorch gate order along the last axis is [i | f | g | o];
        # return blocks in the packed target order (i, f, o, g).
        return (w_t[..., 0:H], w_t[..., H:2 * H],
                w_t[..., 3 * H:4 * H], w_t[..., 2 * H:3 * H])

    # ---- layer-0 input weight, augmented to the packed gate layout (D, G) ----
    wih0, whh0, _, _ = params["layer0"]
    wih0_aug = jnp.zeros((D, G), jnp.float32)
    for gi, blk in enumerate(gate_blocks(wih0.T)):                  # (D, H)
        wih0_aug = wih0_aug.at[:, gi * HN:gi * HN + H].set(blk)

    # ---- fused wavefront recurrent weight (HN, G) ----
    # layer-0 gate columns: rows 0:H = Whh0 (input path hoisted above);
    # layer-l (l>=1) gate columns: rows (l-1)H:lH = Wih_l, rows lH:(l+1)H = Whh_l.
    w_fused = jnp.zeros((HN, G), jnp.float32)
    for gi, blk in enumerate(gate_blocks(whh0.T)):                  # (H, H)
        w_fused = w_fused.at[0:H, gi * HN:gi * HN + H].set(blk)
    for l in range(1, NL):
        wih, whh, _, _ = params[f"layer{l}"]
        ihb = gate_blocks(wih.T)
        hhb = gate_blocks(whh.T)
        for gi in range(4):
            col = gi * HN + l * H
            w_fused = w_fused.at[(l - 1) * H:l * H, col:col + H].set(ihb[gi])
            w_fused = w_fused.at[l * H:(l + 1) * H, col:col + H].set(hhb[gi])

    # ---- all biases (b_ih + b_hh per layer) folded into one (1, G) row ----
    bias_row = jnp.zeros((1, G), jnp.float32)
    for l in range(NL):
        _, _, bih, bhh = params[f"layer{l}"]
        bsum = bih + bhh                                            # (4H,)
        bblk = (bsum[0:H], bsum[H:2 * H], bsum[3 * H:4 * H], bsum[2 * H:3 * H])
        for gi in range(4):
            col = gi * HN + l * H
            bias_row = bias_row.at[0, col:col + H].set(bblk[gi])

    kernel_inputs = [
        x_flat, wih0_aug, bias_row, w_fused,
        params["fc_w"].T,                  # (H, F)
        params["fc_b"][None, :],           # (1, F)
        params["fc_top_w"],                # (1, F) row
        params["fc_top_b"][None, :],       # (1, 1)
    ]

    # Advisory cost estimate so XLA schedules around this latency-bound call.
    S = T + NL - 1
    flops = (2 * T * BP * D * G                    # hoisted projection
             + S * 2 * BP * HN * G                 # wavefront recurrent matmuls
             + S * 10 * BP * HN                    # gate elementwise
             + 2 * BP * H * Fh + 2 * BP * Fh)      # FC head
    transcendentals = S * 6 * BP * HN
    bytes_accessed = sum(int(a.size) * 4 for a in kernel_inputs) + BP * 4

    vmem = pl.BlockSpec(memory_space=pltpu.MemorySpace.VMEM)
    out = pl.pallas_call(
        _make_kernel(NL, H, T, BP),
        out_shape=jax.ShapeDtypeStruct((BP, 1), jnp.float32),
        in_specs=[vmem] * len(kernel_inputs),
        out_specs=vmem,
        cost_estimate=pl.CostEstimate(
            flops=int(flops), transcendentals=int(transcendentals),
            bytes_accessed=int(bytes_accessed)),
    )(*kernel_inputs)
    return out[:B]


# ----------------------------------------------------------------------------
# Deterministic parameter init (matches shapes / init scheme of the module)
# ----------------------------------------------------------------------------
def init_params(key, input_dim, hidden_dim, fc_hidden_dim, n_layers):
    params = {}
    H = hidden_dim
    for l in range(n_layers):
        d_in = input_dim if l == 0 else H
        key, k1, k2 = jax.random.split(key, 3)
        std = (2.0 / (4 * H + d_in)) ** 0.5                 # xavier normal
        wih = std * jax.random.normal(k1, (4 * H, d_in), jnp.float32)
        whh = jax.nn.initializers.orthogonal()(k2, (4 * H, H), jnp.float32)
        b_ih = jnp.zeros((4 * H,), jnp.float32).at[H:2 * H].set(1.0)
        b_hh = jnp.zeros((4 * H,), jnp.float32)
        params[f"layer{l}"] = (wih, whh, b_ih, b_hh)

    key, k3, k4 = jax.random.split(key, 3)
    bound_fc = 1.0 / (H ** 0.5)
    params["fc_w"] = jax.random.uniform(
        k3, (fc_hidden_dim, H), jnp.float32, -bound_fc, bound_fc)
    params["fc_b"] = jnp.zeros((fc_hidden_dim,), jnp.float32)
    bound_top = 1.0 / (fc_hidden_dim ** 0.5)
    params["fc_top_w"] = jax.random.uniform(
        k4, (1, fc_hidden_dim), jnp.float32, -bound_top, bound_top)
    params["fc_top_b"] = jnp.zeros((1,), jnp.float32)
    return params


# ----------------------------------------------------------------------------
# Pure-JAX reference (PyTorch gate order / layout used directly)
# ----------------------------------------------------------------------------
def reference_forward(x_bct, params, n_layers, hidden_dim):
    H = hidden_dim
    x = jnp.transpose(x_bct, (0, 2, 1))       # (B, T, D)
    B, T, _ = x.shape
    layer_in = x
    for l in range(n_layers):
        wih, whh, b_ih, b_hh = params[f"layer{l}"]
        h = jnp.zeros((B, H), jnp.float32)
        c = jnp.zeros((B, H), jnp.float32)
        outs = []
        for t in range(T):
            g = layer_in[:, t, :] @ wih.T + b_ih + h @ whh.T + b_hh
            i = jax.nn.sigmoid(g[:, 0:H])
            f = jax.nn.sigmoid(g[:, H:2 * H])
            gg = jnp.tanh(g[:, 2 * H:3 * H])
            o = jax.nn.sigmoid(g[:, 3 * H:4 * H])
            c = f * c + i * gg
            h = o * jnp.tanh(c)
            outs.append(h)
        layer_in = jnp.stack(outs, axis=1)
    h_last = layer_in[:, -1, :]
    hid = jax.nn.relu(h_last @ params["fc_w"].T + params["fc_b"])
    return hid @ params["fc_top_w"].T + params["fc_top_b"]


if __name__ == "__main__":
    # Config consistent with the module:
    # input_size=(4,4) -> input_dim=16, hidden_dim=32, fc_hidden_dim=32,
    # hidden_layers=2, seq=8, batch=2.
    B, D, T = 2, 16, 8
    H, Fh, NL = 32, 32, 2

    key = jax.random.PRNGKey(0)
    kx, kp = jax.random.split(key)
    x = jax.random.normal(kx, (B, D, T), jnp.float32)   # (batch, input_dim, seq)
    params = init_params(kp, D, H, Fh, NL)

    out = ud_lstm_ia_forward(x, params, NL, H, Fh)
    out = jax.block_until_ready(out)

    ref = reference_forward(x, params, NL, H)
    assert out.shape == (B, 1)
    assert jnp.allclose(out, ref, atol=1e-3, rtol=1e-3), (out, ref)

    print("KERNEL_OK")
</pallas_src>

<mosaic_0001>
module attributes {stable_mosaic.version = 11 : i64} {
  func.func @kernel(%arg0: memref<64x16xf32, #tpu.memory_space<vmem>>, %arg1: memref<16x256xf32, #tpu.memory_space<vmem>>, %arg2: memref<1x256xf32, #tpu.memory_space<vmem>>, %arg3: memref<64x256xf32, #tpu.memory_space<vmem>>, %arg4: memref<32x32xf32, #tpu.memory_space<vmem>>, %arg5: memref<1x32xf32, #tpu.memory_space<vmem>>, %arg6: memref<1x32xf32, #tpu.memory_space<vmem>>, %arg7: memref<1x1xf32, #tpu.memory_space<vmem>>, %arg8: memref<8x1xf32, #tpu.memory_space<vmem>>) attributes {dimension_semantics = [], scalar_prefetch = 0 : i64, scratch_operands = 0 : i64, tpu.core_type = #tpu.core_type<tc>} {
    %c0 = arith.constant 0 : index
    %c0_0 = arith.constant 0 : index
    %0 = vector.load %arg0[%c0, %c0_0] : memref<64x16xf32, #tpu.memory_space<vmem>>, vector<64x16xf32>
    %c0_1 = arith.constant 0 : index
    %c0_2 = arith.constant 0 : index
    %1 = vector.load %arg1[%c0_1, %c0_2] : memref<16x256xf32, #tpu.memory_space<vmem>>, vector<16x256xf32>
    %cst = arith.constant dense<0.000000e+00> : vector<64x256xf32>
    %2 = tpu.matmul %0, %1, %cst {dimension_numbers = #tpu.dot_dimension_numbers<[1], [0], [0], [1], [0, 0, 1, 1], [], []>} : vector<64x16xf32>, vector<16x256xf32>, vector<64x256xf32> -> vector<64x256xf32>
    %c0_3 = arith.constant 0 : index
    %c0_4 = arith.constant 0 : index
    %3 = vector.load %arg2[%c0_3, %c0_4] : memref<1x256xf32, #tpu.memory_space<vmem>>, vector<1x256xf32>
    %4 = vector.broadcast %3 : vector<1x256xf32> to vector<64x256xf32>
    %5 = arith.addf %2, %4 : vector<64x256xf32>
    %c0_5 = arith.constant 0 : index
    %c0_6 = arith.constant 0 : index
    %6 = vector.load %arg3[%c0_5, %c0_6] : memref<64x256xf32, #tpu.memory_space<vmem>>, vector<64x256xf32>
    %c0_7 = arith.constant 0 : index
    %c0_8 = arith.constant 0 : index
    %7 = vector.load %arg2[%c0_7, %c0_8] : memref<1x256xf32, #tpu.memory_space<vmem>>, vector<1x256xf32>
    %cst_9 = arith.constant 0.000000e+00 : f32
    %8 = vector.broadcast %cst_9 : f32 to vector<8x64xf32>
    %cst_10 = arith.constant 0.000000e+00 : f32
    %9 = vector.broadcast %cst_10 : f32 to vector<8x64xf32>
    %10 = vector.extract_strided_slice %5 {offsets = [0, 0], sizes = [8, 256], strides = [1, 1]} : vector<64x256xf32> to vector<8x256xf32>
    %cst_11 = arith.constant dense<0.000000e+00> : vector<8x256xf32>
    %11 = tpu.matmul %8, %6, %cst_11 {dimension_numbers = #tpu.dot_dimension_numbers<[1], [0], [0], [1], [0, 0, 1, 1], [], []>} : vector<8x64xf32>, vector<64x256xf32>, vector<8x256xf32> -> vector<8x256xf32>
    %12 = arith.addf %10, %11 : vector<8x256xf32>
    %13 = vector.extract_strided_slice %12 {offsets = [0, 0], sizes = [8, 192], strides = [1, 1]} : vector<8x256xf32> to vector<8x192xf32>
    %cst_12 = arith.constant 0.000000e+00 : f32
    %14 = vector.broadcast %cst_12 : f32 to vector<8x192xf32>
    %15 = arith.subf %14, %13 : vector<8x192xf32>
    %16 = math.exp %15 : vector<8x192xf32>
    %cst_13 = arith.constant 1.000000e+00 : f32
    %17 = vector.broadcast %cst_13 : f32 to vector<8x192xf32>
    %18 = arith.addf %17, %16 : vector<8x192xf32>
    %19 = tpu.reciprocal %18 {approx = true} : vector<8x192xf32> -> vector<8x192xf32>
    %20 = vector.extract_strided_slice %19 {offsets = [0, 0], sizes = [8, 64], strides = [1, 1]} : vector<8x192xf32> to vector<8x64xf32>
    %21 = vector.extract_strided_slice %19 {offsets = [0, 64], sizes = [8, 64], strides = [1, 1]} : vector<8x192xf32> to vector<8x64xf32>
    %22 = vector.extract_strided_slice %19 {offsets = [0, 128], sizes = [8, 64], strides = [1, 1]} : vector<8x192xf32> to vector<8x64xf32>
    %23 = vector.extract_strided_slice %12 {offsets = [0, 192], sizes = [8, 64], strides = [1, 1]} : vector<8x256xf32> to vector<8x64xf32>
    %24 = math.tanh %23 : vector<8x64xf32>
    %25 = arith.mulf %21, %9 : vector<8x64xf32>
    %26 = arith.mulf %20, %24 : vector<8x64xf32>
    %27 = arith.addf %25, %26 : vector<8x64xf32>
    %28 = math.tanh %27 : vector<8x64xf32>
    %29 = arith.mulf %22, %28 : vector<8x64xf32>
    %cst_14 = arith.constant 1.000000e+00 : f32
    %30 = vector.broadcast %cst_14 : f32 to vector<1x32xf32>
    %cst_15 = arith.constant 0.000000e+00 : f32
    %31 = vector.broadcast %cst_15 : f32 to vector<1x32xf32>
    %32 = tpu.concatenate %30, %31 in 1 : vector<1x32xf32>, vector<1x32xf32> -> vector<1x64xf32>
    %33 = vector.broadcast %32 : vector<1x64xf32> to vector<8x64xf32>
    %34 = arith.mulf %29, %33 : vector<8x64xf32>
    %35 = vector.broadcast %32 : vector<1x64xf32> to vector<8x64xf32>
    %36 = arith.mulf %27, %35 : vector<8x64xf32>
    %37 = vector.extract_strided_slice %5 {offsets = [8, 0], sizes = [8, 256], strides = [1, 1]} : vector<64x256xf32> to vector<8x256xf32>
    %cst_16 = arith.constant dense<0.000000e+00> : vector<8x256xf32>
    %38 = tpu.matmul %34, %6, %cst_16 {dimension_numbers = #tpu.dot_dimension_numbers<[1], [0], [0], [1], [0, 0, 1, 1], [], []>} : vector<8x64xf32>, vector<64x256xf32>, vector<8x256xf32> -> vector<8x256xf32>
    %39 = arith.addf %37, %38 : vector<8x256xf32>
    %40 = vector.extract_strided_slice %39 {offsets = [0, 0], sizes = [8, 192], strides = [1, 1]} : vector<8x256xf32> to vector<8x192xf32>
    %cst_17 = arith.constant 0.000000e+00 : f32
    %41 = vector.broadcast %cst_17 : f32 to vector<8x192xf32>
    %42 = arith.subf %41, %40 : vector<8x192xf32>
    %43 = math.exp %42 : vector<8x192xf32>
    %cst_18 = arith.constant 1.000000e+00 : f32
    %44 = vector.broadcast %cst_18 : f32 to vector<8x192xf32>
    %45 = arith.addf %44, %43 : vector<8x192xf32>
    %46 = tpu.reciprocal %45 {approx = true} : vector<8x192xf32> -> vector<8x192xf32>
    %47 = vector.extract_strided_slice %46 {offsets = [0, 0], sizes = [8, 64], strides = [1, 1]} : vector<8x192xf32> to vector<8x64xf32>
    %48 = vector.extract_strided_slice %46 {offsets = [0, 64], sizes = [8, 64], strides = [1, 1]} : vector<8x192xf32> to vector<8x64xf32>
    %49 = vector.extract_strided_slice %46 {offsets = [0, 128], sizes = [8, 64], strides = [1, 1]} : vector<8x192xf32> to vector<8x64xf32>
    %50 = vector.extract_strided_slice %39 {offsets = [0, 192], sizes = [8, 64], strides = [1, 1]} : vector<8x256xf32> to vector<8x64xf32>
    %51 = math.tanh %50 : vector<8x64xf32>
    %52 = arith.mulf %48, %36 : vector<8x64xf32>
    %53 = arith.mulf %47, %51 : vector<8x64xf32>
    %54 = arith.addf %52, %53 : vector<8x64xf32>
    %55 = math.tanh %54 : vector<8x64xf32>
    %56 = arith.mulf %49, %55 : vector<8x64xf32>
    %57 = vector.extract_strided_slice %5 {offsets = [16, 0], sizes = [8, 256], strides = [1, 1]} : vector<64x256xf32> to vector<8x256xf32>
    %cst_19 = arith.constant dense<0.000000e+00> : vector<8x256xf32>
    %58 = tpu.matmul %56, %6, %cst_19 {dimension_numbers = #tpu.dot_dimension_numbers<[1], [0], [0], [1], [0, 0, 1, 1], [], []>} : vector<8x64xf32>, vector<64x256xf32>, vector<8x256xf32> -> vector<8x256xf32>
    %59 = arith.addf %57, %58 : vector<8x256xf32>
    %60 = vector.extract_strided_slice %59 {offsets = [0, 0], sizes = [8, 192], strides = [1, 1]} : vector<8x256xf32> to vector<8x192xf32>
    %cst_20 = arith.constant 0.000000e+00 : f32
    %61 = vector.broadcast %cst_20 : f32 to vector<8x192xf32>
    %62 = arith.subf %61, %60 : vector<8x192xf32>
    %63 = math.exp %62 : vector<8x192xf32>
    %cst_21 = arith.constant 1.000000e+00 : f32
    %64 = vector.broadcast %cst_21 : f32 to vector<8x192xf32>
    %65 = arith.addf %64, %63 : vector<8x192xf32>
    %66 = tpu.reciprocal %65 {approx = true} : vector<8x192xf32> -> vector<8x192xf32>
    %67 = vector.extract_strided_slice %66 {offsets = [0, 0], sizes = [8, 64], strides = [1, 1]} : vector<8x192xf32> to vector<8x64xf32>
    %68 = vector.extract_strided_slice %66 {offsets = [0, 64], sizes = [8, 64], strides = [1, 1]} : vector<8x192xf32> to vector<8x64xf32>
    %69 = vector.extract_strided_slice %66 {offsets = [0, 128], sizes = [8, 64], strides = [1, 1]} : vector<8x192xf32> to vector<8x64xf32>
    %70 = vector.extract_strided_slice %59 {offsets = [0, 192], sizes = [8, 64], strides = [1, 1]} : vector<8x256xf32> to vector<8x64xf32>
    %71 = math.tanh %70 : vector<8x64xf32>
    %72 = arith.mulf %68, %54 : vector<8x64xf32>
    %73 = arith.mulf %67, %71 : vector<8x64xf32>
    %74 = arith.addf %72, %73 : vector<8x64xf32>
    %75 = math.tanh %74 : vector<8x64xf32>
    %76 = arith.mulf %69, %75 : vector<8x64xf32>
    %77 = vector.extract_strided_slice %5 {offsets = [24, 0], sizes = [8, 256], strides = [1, 1]} : vector<64x256xf32> to vector<8x256xf32>
    %cst_22 = arith.constant dense<0.000000e+00> : vector<8x256xf32>
    %78 = tpu.matmul %76, %6, %cst_22 {dimension_numbers = #tpu.dot_dimension_numbers<[1], [0], [0], [1], [0, 0, 1, 1], [], []>} : vector<8x64xf32>, vector<64x256xf32>, vector<8x256xf32> -> vector<8x256xf32>
    %79 = arith.addf %77, %78 : vector<8x256xf32>
    %80 = vector.extract_strided_slice %79 {offsets = [0, 0], sizes = [8, 192], strides = [1, 1]} : vector<8x256xf32> to vector<8x192xf32>
    %cst_23 = arith.constant 0.000000e+00 : f32
    %81 = vector.broadcast %cst_23 : f32 to vector<8x192xf32>
    %82 = arith.subf %81, %80 : vector<8x192xf32>
    %83 = math.exp %82 : vector<8x192xf32>
    %cst_24 = arith.constant 1.000000e+00 : f32
    %84 = vector.broadcast %cst_24 : f32 to vector<8x192xf32>
    %85 = arith.addf %84, %83 : vector<8x192xf32>
    %86 = tpu.reciprocal %85 {approx = true} : vector<8x192xf32> -> vector<8x192xf32>
    %87 = vector.extract_strided_slice %86 {offsets = [0, 0], sizes = [8, 64], strides = [1, 1]} : vector<8x192xf32> to vector<8x64xf32>
    %88 = vector.extract_strided_slice %86 {offsets = [0, 64], sizes = [8, 64], strides = [1, 1]} : vector<8x192xf32> to vector<8x64xf32>
    %89 = vector.extract_strided_slice %86 {offsets = [0, 128], sizes = [8, 64], strides = [1, 1]} : vector<8x192xf32> to vector<8x64xf32>
    %90 = vector.extract_strided_slice %79 {offsets = [0, 192], sizes = [8, 64], strides = [1, 1]} : vector<8x256xf32> to vector<8x64xf32>
    %91 = math.tanh %90 : vector<8x64xf32>
    %92 = arith.mulf %88, %74 : vector<8x64xf32>
    %93 = arith.mulf %87, %91 : vector<8x64xf32>
    %94 = arith.addf %92, %93 : vector<8x64xf32>
    %95 = math.tanh %94 : vector<8x64xf32>
    %96 = arith.mulf %89, %95 : vector<8x64xf32>
    %97 = vector.extract_strided_slice %5 {offsets = [32, 0], sizes = [8, 256], strides = [1, 1]} : vector<64x256xf32> to vector<8x256xf32>
    %cst_25 = arith.constant dense<0.000000e+00> : vector<8x256xf32>
    %98 = tpu.matmul %96, %6, %cst_25 {dimension_numbers = #tpu.dot_dimension_numbers<[1], [0], [0], [1], [0, 0, 1, 1], [], []>} : vector<8x64xf32>, vector<64x256xf32>, vector<8x256xf32> -> vector<8x256xf32>
    %99 = arith.addf %97, %98 : vector<8x256xf32>
    %100 = vector.extract_strided_slice %99 {offsets = [0, 0], sizes = [8, 192], strides = [1, 1]} : vector<8x256xf32> to vector<8x192xf32>
    %cst_26 = arith.constant 0.000000e+00 : f32
    %101 = vector.broadcast %cst_26 : f32 to vector<8x192xf32>
    %102 = arith.subf %101, %100 : vector<8x192xf32>
    %103 = math.exp %102 : vector<8x192xf32>
    %cst_27 = arith.constant 1.000000e+00 : f32
    %104 = vector.broadcast %cst_27 : f32 to vector<8x192xf32>
    %105 = arith.addf %104, %103 : vector<8x192xf32>
    %106 = tpu.reciprocal %105 {approx = true} : vector<8x192xf32> -> vector<8x192xf32>
    %107 = vector.extract_strided_slice %106 {offsets = [0, 0], sizes = [8, 64], strides = [1, 1]} : vector<8x192xf32> to vector<8x64xf32>
    %108 = vector.extract_strided_slice %106 {offsets = [0, 64], sizes = [8, 64], strides = [1, 1]} : vector<8x192xf32> to vector<8x64xf32>
    %109 = vector.extract_strided_slice %106 {offsets = [0, 128], sizes = [8, 64], strides = [1, 1]} : vector<8x192xf32> to vector<8x64xf32>
    %110 = vector.extract_strided_slice %99 {offsets = [0, 192], sizes = [8, 64], strides = [1, 1]} : vector<8x256xf32> to vector<8x64xf32>
    %111 = math.tanh %110 : vector<8x64xf32>
    %112 = arith.mulf %108, %94 : vector<8x64xf32>
    %113 = arith.mulf %107, %111 : vector<8x64xf32>
    %114 = arith.addf %112, %113 : vector<8x64xf32>
    %115 = math.tanh %114 : vector<8x64xf32>
    %116 = arith.mulf %109, %115 : vector<8x64xf32>
    %117 = vector.extract_strided_slice %5 {offsets = [40, 0], sizes = [8, 256], strides = [1, 1]} : vector<64x256xf32> to vector<8x256xf32>
    %cst_28 = arith.constant dense<0.000000e+00> : vector<8x256xf32>
    %118 = tpu.matmul %116, %6, %cst_28 {dimension_numbers = #tpu.dot_dimension_numbers<[1], [0], [0], [1], [0, 0, 1, 1], [], []>} : vector<8x64xf32>, vector<64x256xf32>, vector<8x256xf32> -> vector<8x256xf32>
    %119 = arith.addf %117, %118 : vector<8x256xf32>
    %120 = vector.extract_strided_slice %119 {offsets = [0, 0], sizes = [8, 192], strides = [1, 1]} : vector<8x256xf32> to vector<8x192xf32>
    %cst_29 = arith.constant 0.000000e+00 : f32
    %121 = vector.broadcast %cst_29 : f32 to vector<8x192xf32>
    %122 = arith.subf %121, %120 : vector<8x192xf32>
    %123 = math.exp %122 : vector<8x192xf32>
    %cst_30 = arith.constant 1.000000e+00 : f32
    %124 = vector.broadcast %cst_30 : f32 to vector<8x192xf32>
    %125 = arith.addf %124, %123 : vector<8x192xf32>
    %126 = tpu.reciprocal %125 {approx = true} : vector<8x192xf32> -> vector<8x192xf32>
    %127 = vector.extract_strided_slice %126 {offsets = [0, 0], sizes = [8, 64], strides = [1, 1]} : vector<8x192xf32> to vector<8x64xf32>
    %128 = vector.extract_strided_slice %126 {offsets = [0, 64], sizes = [8, 64], strides = [1, 1]} : vector<8x192xf32> to vector<8x64xf32>
    %129 = vector.extract_strided_slice %126 {offsets = [0, 128], sizes = [8, 64], strides = [1, 1]} : vector<8x192xf32> to vector<8x64xf32>
    %130 = vector.extract_strided_slice %119 {offsets = [0, 192], sizes = [8, 64], strides = [1, 1]} : vector<8x256xf32> to vector<8x64xf32>
    %131 = math.tanh %130 : vector<8x64xf32>
    %132 = arith.mulf %128, %114 : vector<8x64xf32>
    %133 = arith.mulf %127, %131 : vector<8x64xf32>
    %134 = arith.addf %132, %133 : vector<8x64xf32>
    %135 = math.tanh %134 : vector<8x64xf32>
    %136 = arith.mulf %129, %135 : vector<8x64xf32>
    %137 = vector.extract_strided_slice %5 {offsets = [48, 0], sizes = [8, 256], strides = [1, 1]} : vector<64x256xf32> to vector<8x256xf32>
    %cst_31 = arith.constant dense<0.000000e+00> : vector<8x256xf32>
    %138 = tpu.matmul %136, %6, %cst_31 {dimension_numbers = #tpu.dot_dimension_numbers<[1], [0], [0], [1], [0, 0, 1, 1], [], []>} : vector<8x64xf32>, vector<64x256xf32>, vector<8x256xf32> -> vector<8x256xf32>
    %139 = arith.addf %137, %138 : vector<8x256xf32>
    %140 = vector.extract_strided_slice %139 {offsets = [0, 0], sizes = [8, 192], strides = [1, 1]} : vector<8x256xf32> to vector<8x192xf32>
    %cst_32 = arith.constant 0.000000e+00 : f32
    %141 = vector.broadcast %cst_32 : f32 to vector<8x192xf32>
    %142 = arith.subf %141, %140 : vector<8x192xf32>
    %143 = math.exp %142 : vector<8x192xf32>
    %cst_33 = arith.constant 1.000000e+00 : f32
    %144 = vector.broadcast %cst_33 : f32 to vector<8x192xf32>
    %145 = arith.addf %144, %143 : vector<8x192xf32>
    %146 = tpu.reciprocal %145 {approx = true} : vector<8x192xf32> -> vector<8x192xf32>
    %147 = vector.extract_strided_slice %146 {offsets = [0, 0], sizes = [8, 64], strides = [1, 1]} : vector<8x192xf32> to vector<8x64xf32>
    %148 = vector.extract_strided_slice %146 {offsets = [0, 64], sizes = [8, 64], strides = [1, 1]} : vector<8x192xf32> to vector<8x64xf32>
    %149 = vector.extract_strided_slice %146 {offsets = [0, 128], sizes = [8, 64], strides = [1, 1]} : vector<8x192xf32> to vector<8x64xf32>
    %150 = vector.extract_strided_slice %139 {offsets = [0, 192], sizes = [8, 64], strides = [1, 1]} : vector<8x256xf32> to vector<8x64xf32>
    %151 = math.tanh %150 : vector<8x64xf32>
    %152 = arith.mulf %148, %134 : vector<8x64xf32>
    %153 = arith.mulf %147, %151 : vector<8x64xf32>
    %154 = arith.addf %152, %153 : vector<8x64xf32>
    %155 = math.tanh %154 : vector<8x64xf32>
    %156 = arith.mulf %149, %155 : vector<8x64xf32>
    %157 = vector.extract_strided_slice %5 {offsets = [56, 0], sizes = [8, 256], strides = [1, 1]} : vector<64x256xf32> to vector<8x256xf32>
    %cst_34 = arith.constant dense<0.000000e+00> : vector<8x256xf32>
    %158 = tpu.matmul %156, %6, %cst_34 {dimension_numbers = #tpu.dot_dimension_numbers<[1], [0], [0], [1], [0, 0, 1, 1], [], []>} : vector<8x64xf32>, vector<64x256xf32>, vector<8x256xf32> -> vector<8x256xf32>
    %159 = arith.addf %157, %158 : vector<8x256xf32>
    %160 = vector.extract_strided_slice %159 {offsets = [0, 0], sizes = [8, 192], strides = [1, 1]} : vector<8x256xf32> to vector<8x192xf32>
    %cst_35 = arith.constant 0.000000e+00 : f32
    %161 = vector.broadcast %cst_35 : f32 to vector<8x192xf32>
    %162 = arith.subf %161, %160 : vector<8x192xf32>
    %163 = math.exp %162 : vector<8x192xf32>
    %cst_36 = arith.constant 1.000000e+00 : f32
    %164 = vector.broadcast %cst_36 : f32 to vector<8x192xf32>
    %165 = arith.addf %164, %163 : vector<8x192xf32>
    %166 = tpu.reciprocal %165 {approx = true} : vector<8x192xf32> -> vector<8x192xf32>
    %167 = vector.extract_strided_slice %166 {offsets = [0, 0], sizes = [8, 64], strides = [1, 1]} : vector<8x192xf32> to vector<8x64xf32>
    %168 = vector.extract_strided_slice %166 {offsets = [0, 64], sizes = [8, 64], strides = [1, 1]} : vector<8x192xf32> to vector<8x64xf32>
    %169 = vector.extract_strided_slice %166 {offsets = [0, 128], sizes = [8, 64], strides = [1, 1]} : vector<8x192xf32> to vector<8x64xf32>
    %170 = vector.extract_strided_slice %159 {offsets = [0, 192], sizes = [8, 64], strides = [1, 1]} : vector<8x256xf32> to vector<8x64xf32>
    %171 = math.tanh %170 : vector<8x64xf32>
    %172 = arith.mulf %168, %154 : vector<8x64xf32>
    %173 = arith.mulf %167, %171 : vector<8x64xf32>
    %174 = arith.addf %172, %173 : vector<8x64xf32>
    %175 = math.tanh %174 : vector<8x64xf32>
    %176 = arith.mulf %169, %175 : vector<8x64xf32>
    %cst_37 = arith.constant dense<0.000000e+00> : vector<8x256xf32>
    %177 = tpu.matmul %176, %6, %cst_37 {dimension_numbers = #tpu.dot_dimension_numbers<[1], [0], [0], [1], [0, 0, 1, 1], [], []>} : vector<8x64xf32>, vector<64x256xf32>, vector<8x256xf32> -> vector<8x256xf32>
    %178 = vector.broadcast %7 : vector<1x256xf32> to vector<8x256xf32>
    %179 = arith.addf %178, %177 : vector<8x256xf32>
    %180 = vector.extract_strided_slice %179 {offsets = [0, 0], sizes = [8, 192], strides = [1, 1]} : vector<8x256xf32> to vector<8x192xf32>
    %cst_38 = arith.constant 0.000000e+00 : f32
    %181 = vector.broadcast %cst_38 : f32 to vector<8x192xf32>
    %182 = arith.subf %181, %180 : vector<8x192xf32>
    %183 = math.exp %182 : vector<8x192xf32>
    %cst_39 = arith.constant 1.000000e+00 : f32
    %184 = vector.broadcast %cst_39 : f32 to vector<8x192xf32>
    %185 = arith.addf %184, %183 : vector<8x192xf32>
    %186 = tpu.reciprocal %185 {approx = true} : vector<8x192xf32> -> vector<8x192xf32>
    %187 = vector.extract_strided_slice %186 {offsets = [0, 0], sizes = [8, 64], strides = [1, 1]} : vector<8x192xf32> to vector<8x64xf32>
    %188 = vector.extract_strided_slice %186 {offsets = [0, 64], sizes = [8, 64], strides = [1, 1]} : vector<8x192xf32> to vector<8x64xf32>
    %189 = vector.extract_strided_slice %186 {offsets = [0, 128], sizes = [8, 64], strides = [1, 1]} : vector<8x192xf32> to vector<8x64xf32>
    %190 = vector.extract_strided_slice %179 {offsets = [0, 192], sizes = [8, 64], strides = [1, 1]} : vector<8x256xf32> to vector<8x64xf32>
    %191 = math.tanh %190 : vector<8x64xf32>
    %192 = arith.mulf %188, %174 : vector<8x64xf32>
    %193 = arith.mulf %187, %191 : vector<8x64xf32>
    %194 = arith.addf %192, %193 : vector<8x64xf32>
    %195 = math.tanh %194 : vector<8x64xf32>
    %196 = arith.mulf %189, %195 : vector<8x64xf32>
    %197 = vector.extract_strided_slice %196 {offsets = [0, 32], sizes = [8, 32], strides = [1, 1]} : vector<8x64xf32> to vector<8x32xf32>
    %c0_40 = arith.constant 0 : index
    %c0_41 = arith.constant 0 : index
    %198 = vector.load %arg4[%c0_40, %c0_41] : memref<32x32xf32, #tpu.memory_space<vmem>>, vector<32x32xf32>
    %cst_42 = arith.constant dense<0.000000e+00> : vector<8x32xf32>
    %199 = tpu.matmul %197, %198, %cst_42 {dimension_numbers = #tpu.dot_dimension_numbers<[1], [0], [0], [1], [0, 0, 1, 1], [], []>} : vector<8x32xf32>, vector<32x32xf32>, vector<8x32xf32> -> vector<8x32xf32>
    %c0_43 = arith.constant 0 : index
    %c0_44 = arith.constant 0 : index
    %200 = vector.load %arg5[%c0_43, %c0_44] : memref<1x32xf32, #tpu.memory_space<vmem>>, vector<1x32xf32>
    %201 = vector.broadcast %200 : vector<1x32xf32> to vector<8x32xf32>
    %202 = arith.addf %199, %201 : vector<8x32xf32>
    %cst_45 = arith.constant 0.000000e+00 : f32
    %203 = vector.broadcast %cst_45 : f32 to vector<8x32xf32>
    %204 = arith.maximumf %202, %203 : vector<8x32xf32>
    %c0_46 = arith.constant 0 : index
    %c0_47 = arith.constant 0 : index
    %205 = vector.load %arg6[%c0_46, %c0_47] : memref<1x32xf32, #tpu.memory_space<vmem>>, vector<1x32xf32>
    %206 = vector.broadcast %205 : vector<1x32xf32> to vector<8x32xf32>
    %207 = arith.mulf %204, %206 : vector<8x32xf32>
    %cst_48 = arith.constant dense<0.000000e+00> : vector<8xf32>
    %208 = vector.multi_reduction <add>, %207, %cst_48 [1] : vector<8x32xf32> to vector<8xf32>
    %209 = vector.shape_cast %208 : vector<8xf32> to vector<8x1xf32>
    %c0_49 = arith.constant 0 : index
    %c0_50 = arith.constant 0 : index
    %210 = vector.load %arg7[%c0_49, %c0_50] : memref<1x1xf32, #tpu.memory_space<vmem>>, vector<1x1xf32>
    %211 = vector.broadcast %210 : vector<1x1xf32> to vector<8x1xf32>
    %212 = arith.addf %209, %211 : vector<8x1xf32>
    %c0_51 = arith.constant 0 : index
    %c0_52 = arith.constant 0 : index
    %213 = vector.load %arg8[%c0_51, %c0_52] : memref<8x1xf32, #tpu.memory_space<vmem>>, vector<8x1xf32>
    tpu.vector_store %arg8[%c0_51, %c0_52], %212 {strides = array<i32>} : memref<8x1xf32, #tpu.memory_space<vmem>>, vector<8x1xf32>,
    return
  }
}

</mosaic_0001>

<llo_original>
// kernel: tpu_custom_call.1
$region0: #{tpu_custom_call.1}
  #allocation0 [shape = 'u32[]', space=smem, size = 0x4, offset = 0x4, fixed_abs, tag = 'smem constant byte address 0x4 - core index']
  #allocation1 [shape = 'u32[144,128]{1,0:T(1,128)}', space=vmem, size = 0x12000, scoped, tag = 'internal scratch']
  #allocation2 [shape = 'f32[1,1]{1,0:T(1,128)S(1)}', space=vmem, size = 0x200, scoped, tag = 'scoped memory for tpu_custom_call.1']
  %s0 = inlined_call_operand.vmem [shape: f32[64,16], index: 0, kind: input, shape index: {}]
  %s1 = inlined_call_operand.vmem [shape: f32[16,256], index: 1, kind: input, shape index: {}]
  %s2 = inlined_call_operand.vmem [shape: f32[1,256], index: 2, kind: input, shape index: {}]
  %s3 = inlined_call_operand.hbm [shape: f32[64,256], index: 3, kind: input, shape index: {}]
  %s4 = inlined_call_operand.vmem [shape: f32[32,32], index: 4, kind: input, shape index: {}]
  %s5 = inlined_call_operand.vmem [shape: f32[1,32], index: 5, kind: input, shape index: {}]
  %s6 = inlined_call_operand.vmem [shape: f32[1,32], index: 6, kind: input, shape index: {}]
  %s7 = inlined_call_operand.<no memory space> [shape: f32[1,1], index: 7, kind: input, shape index: {}]
  %s8 = inlined_call_operand.vmem [shape: f32[8,1], index: 8, kind: output, shape index: {}]
  %s9 = sld [smem:[#allocation0]]
  $region46: #{tpu_custom_call.1} parent=0
    _
  %s11 = ssub.s32 1, %s9
  %s12 = scalar_select 0, %s11, %s9
  %v13 = vstv %s7
  %14 = vst [vmem:[#allocation2] sm:$0x1] %v13
  $region1: #{tpu_custom_call.1} parent=0
    #allocation3 [shape = 'u8[65536]{0}', space=vmem, size = 0x10000, scoped, tag = 'input window, operand 3, single buffered']
    #allocation4 [shape = 's32[1]{0}', space=sflag, size = 0x4, scoped, tag = 'scoped memory for tpu_custom_call.1']
    %15 = vsyncpa [#allocation4], 0
    // Predicated region
    $region2: #{tpu_custom_call.1} parent=1 // pred_check
      _
    $region3: #{tpu_custom_call.1} parent=1 // pred_check_branch
      %17 = sbr.rel (0) target = $region5
    $region4: #{tpu_custom_call.1} parent=1 // pred_region
      _
    $region5: #{tpu_custom_call.1} parent=1 // pred_fallthru
      _
    // Predicated region
    $region6: #{tpu_custom_call.1} parent=1 // pred_check
      _
    $region7: #{tpu_custom_call.1} parent=1 // pred_check_branch
      %19 = sbr.rel (0) target = $region9
    $region8: #{tpu_custom_call.1} parent=1 // pred_region
      _
    $region9: #{tpu_custom_call.1} parent=1 // pred_fallthru
      _
    // Predicated region
    $region10: #{tpu_custom_call.1} parent=1 // pred_check
      _
    $region11: #{tpu_custom_call.1} parent=1 // pred_check_branch
      %21 = sbr.rel (0) target = $region13
    $region12: #{tpu_custom_call.1} parent=1 // pred_region
      _
    $region13: #{tpu_custom_call.1} parent=1 // pred_fallthru
      _
    // Predicated region
    $region14: #{tpu_custom_call.1} parent=1 // pred_check
      _
    $region15: #{tpu_custom_call.1} parent=1 // pred_check_branch
      %23 = sbr.rel (0) target = $region17
    $region16: #{tpu_custom_call.1} parent=1 // pred_region
      %s25 = ssub.s32 2048, 2048
      %26 = vsyncadd [#allocation4], %s25
      %s27 = sshll.u32 [#allocation3], 4
      %s28 = int_to_ptr.vmem [resolvable:$true] %s27
      %33 = dma.hbm_to_vmem [thread:$0]  %s3, 2048, %s28, [#allocation4], 256, 256, 16
    $region17: #{tpu_custom_call.1} parent=1 // pred_fallthru
      _
    // Predicated region
    $region18: #{tpu_custom_call.1} parent=1 // pred_check
      _
    $region19: #{tpu_custom_call.1} parent=1 // pred_check_branch
      %35 = sbr.rel (0) target = $region21
    $region20: #{tpu_custom_call.1} parent=1 // pred_region
      _
    $region21: #{tpu_custom_call.1} parent=1 // pred_fallthru
      _
    // Predicated region
    $region22: #{tpu_custom_call.1} parent=1 // pred_check
      _
    $region23: #{tpu_custom_call.1} parent=1 // pred_check_branch
      %37 = sbr.rel (0) target = $region25
    $region24: #{tpu_custom_call.1} parent=1 // pred_region
      _
    $region25: #{tpu_custom_call.1} parent=1 // pred_fallthru
      _
    // Predicated region
    $region26: #{tpu_custom_call.1} parent=1 // pred_check
      _
    $region27: #{tpu_custom_call.1} parent=1 // pred_check_branch
      %39 = sbr.rel (0) target = $region29
    $region28: #{tpu_custom_call.1} parent=1 // pred_region
      _
    $region29: #{tpu_custom_call.1} parent=1 // pred_fallthru
      _
    // Predicated region
    $region30: #{tpu_custom_call.1} parent=1 // pred_check
      _
    $region31: #{tpu_custom_call.1} parent=1 // pred_check_branch
      %41 = sbr.rel (0) target = $region33
    $region32: #{tpu_custom_call.1} parent=1 // pred_region
      _
    $region33: #{tpu_custom_call.1} parent=1 // pred_fallthru
      _
    // Predicated region
    $region34: #{tpu_custom_call.1} parent=1 // pred_check
      _
    $region35: #{tpu_custom_call.1} parent=1 // pred_check_branch
      %43 = sbr.rel (0) target = $region37
    $region36: #{tpu_custom_call.1} parent=1 // pred_region
      %44 = dma.done [#allocation4], 2048
    $region37: #{tpu_custom_call.1} parent=1 // pred_fallthru
      _
    %v45 = vld [vmem:[%s0] sm:$0xff]
    %v46 = vld [vmem:[%s0 + $0x8] sm:$0xff]
    %v47 = vld [vmem:[%s0 + $0x10] sm:$0xff]
    %v48 = vld [vmem:[%s0 + $0x18] sm:$0xff]
    %v49 = vld [vmem:[%s0 + $0x20] sm:$0xff]
    %v50 = vld [vmem:[%s0 + $0x28] sm:$0xff]
    %v51 = vld [vmem:[%s0 + $0x30] sm:$0xff]
    %v52 = vld [vmem:[%s0 + $0x38] sm:$0xff]
    %v53 = vld [vmem:[%s1] sm:$0xff]
    %v54 = vld [vmem:[%s1 + $0x8] sm:$0xff]
    %v55 = vld [vmem:[%s1 + $0x10] sm:$0xff]
    %v56 = vld [vmem:[%s1 + $0x18] sm:$0xff]
    %v57 = vld [vmem:[%s2] sm:$0x3]
    %v59 = vlaneseq
    %v60 = vshrl.u32 %v59, 7
    %v61 = vsub.s32 0, %v60
    %v62 = vrot.slane %v57, %v61
    %v63 = vlaneseq
    %v64 = vshrl.u32 %v63, 7
    %v65 = vsub.s32 1, %v64
    %v66 = vrot.slane %v57, %v65
    %vm69 = vcmask 130048
    %v71 = vsel %vm69, %v45, 0
    %v74 = vsel %vm69, %v46, 0
    %v77 = vsel %vm69, %v47, 0
    %v80 = vsel %vm69, %v48, 0
    %v83 = vsel %vm69, %v49, 0
    %v86 = vsel %vm69, %v50, 0
    %v89 = vsel %vm69, %v51, 0
    %v92 = vsel %vm69, %v52, 0
    %94 = vmatprep.subr.mxu0 0.0
    %95 = vmatpush1.msra.mxu0 0.0
    %96 = vmatprep.subr.mxu0 0.0
    %97 = vmatpush1.msra.mxu0 0.0
    %98 = vmatprep.subr.mxu0 0.0
    %99 = vmatpush1.msra.mxu0 0.0
    %100 = vmatprep.subr.mxu0 0.0
    %101 = vmatpush1.msra.mxu0 0.0
    %102 = vmatprep.subr.mxu0 0.0
    %103 = vmatpush1.msra.mxu0 0.0
    %104 = vmatprep.subr.mxu0 0.0
    %105 = vmatpush1.msra.mxu0 0.0
    %106 = vmatprep.subr.mxu0 0.0
    %107 = vmatpush1.msra.mxu0 0.0
    %108 = vmatprep.subr.mxu0 0.0
    %109 = vmatpush1.msra.mxu0 0.0
    %110 = vmatprep.subr.mxu0 0.0
    %111 = vmatpush1.msra.mxu0 0.0
    %112 = vmatprep.subr.mxu0 0.0
    %113 = vmatpush1.msra.mxu0 0.0
    %114 = vmatprep.subr.mxu0 0.0
    %115 = vmatpush1.msra.mxu0 0.0
    %116 = vmatprep.subr.mxu0 0.0
    %117 = vmatpush1.msra.mxu0 0.0
    %118 = vmatprep.subr.mxu0 0.0
    %119 = vmatpush1.msra.mxu0 0.0
    %120 = vmatprep.subr.mxu0 0.0
    %121 = vmatpush1.msra.mxu0 0.0
    %122 = vmatprep.subr.mxu0 %v56
    %123 = vmatpush1.msra.mxu0 %v55
    %124 = vmatprep.subr.mxu0 %v54
    %125 = vmatpush1.msra.mxu0 %v53
    %126 = vmatprep.subr.mxu0 0.0
    %127 = vmatpush2.msra.mxu0 0.0
    %128 = vmatprep.subr.mxu0 0.0
    %129 = vmatpush2.msra.mxu0 0.0
    %130 = vmatprep.subr.mxu0 0.0
    %131 = vmatpush2.msra.mxu0 0.0
    %132 = vmatprep.subr.mxu0 0.0
    %133 = vmatpush2.msra.mxu0 0.0
    %134 = vmatprep.subr.mxu0 0.0
    %135 = vmatpush2.msra.mxu0 0.0
    %136 = vmatprep.subr.mxu0 0.0
    %137 = vmatpush2.msra.mxu0 0.0
    %138 = vmatprep.subr.mxu0 0.0
    %139 = vmatpush2.msra.mxu0 0.0
    %140 = vmatprep.subr.mxu0 0.0
    %141 = vmatpush2.msra.mxu0 0.0
    %142 = vmatprep.subr.mxu0 0.0
    %143 = vmatpush2.msra.mxu0 0.0
    %144 = vmatprep.subr.mxu0 0.0
    %145 = vmatpush2.msra.mxu0 0.0
    %146 = vmatprep.subr.mxu0 0.0
    %147 = vmatpush2.msra.mxu0 0.0
    %148 = vmatprep.subr.mxu0 0.0
    %149 = vmatpush2.msra.mxu0 0.0
    %150 = vmatprep.subr.mxu0 0.0
    %151 = vmatpush2.msra.mxu0 0.0
    %152 = vmatprep.subr.mxu0 0.0
    %153 = vmatpush2.msra.mxu0 0.0
    %154 = vmatprep.subr.mxu0 0.0
    %155 = vmatpush2.msra.mxu0 0.0
    %156 = vmatprep.subr.mxu0 0.0
    %157 = vmatpush2.msra.mxu0 0.0
    %158 = vmatprep.mubr.f32.mxu0 0.0
    %159 = vmatmul.mubr.f32.gmra.mxu0 %v71
    %v160 = vpop.f32.mrf.mxu0
    %v161 = vadd.f32 %v62, %v160
    %v162 = vpop.f32.mrf.mxu0
    %v163 = vadd.f32 %v66, %v162
    %164 = vmatprep.mubr.f32.mxu0 0.0
    %165 = vmatmul.mubr.f32.gmra.mxu0 %v74
    %v166 = vpop.f32.mrf.mxu0
    %v167 = vadd.f32 %v62, %v166
    %v168 = vpop.f32.mrf.mxu0
    %v169 = vadd.f32 %v66, %v168
    %170 = vmatprep.mubr.f32.mxu0 0.0
    %171 = vmatmul.mubr.f32.gmra.mxu0 %v77
    %v172 = vpop.f32.mrf.mxu0
    %v173 = vadd.f32 %v62, %v172
    %v174 = vpop.f32.mrf.mxu0
    %v175 = vadd.f32 %v66, %v174
    %176 = vmatprep.mubr.f32.mxu0 0.0
    %177 = vmatmul.mubr.f32.gmra.mxu0 %v80
    %v178 = vpop.f32.mrf.mxu0
    %v179 = vadd.f32 %v62, %v178
    %v180 = vpop.f32.mrf.mxu0
    %v181 = vadd.f32 %v66, %v180
    %182 = vmatprep.mubr.f32.mxu0 0.0
    %183 = vmatmul.mubr.f32.gmra.mxu0 %v83
    %v184 = vpop.f32.mrf.mxu0
    %v185 = vadd.f32 %v62, %v184
    %v186 = vpop.f32.mrf.mxu0
    %v187 = vadd.f32 %v66, %v186
    %188 = vmatprep.mubr.f32.mxu0 0.0
    %189 = vmatmul.mubr.f32.gmra.mxu0 %v86
    %v190 = vpop.f32.mrf.mxu0
    %v191 = vadd.f32 %v62, %v190
    %v192 = vpop.f32.mrf.mxu0
    %v193 = vadd.f32 %v66, %v192
    %194 = vmatprep.mubr.f32.mxu0 0.0
    %195 = vmatmul.mubr.f32.gmra.mxu0 %v89
    %v196 = vpop.f32.mrf.mxu0
    %v197 = vadd.f32 %v62, %v196
    %v198 = vpop.f32.mrf.mxu0
    %v199 = vadd.f32 %v66, %v198
    %200 = vmatprep.mubr.f32.mxu0 0.0
    %201 = vmatmul.mubr.f32.gmra.mxu0 %v92
    %v202 = vpop.f32.mrf.mxu0
    %v203 = vadd.f32 %v62, %v202
    %v204 = vpop.f32.mrf.mxu0
    %v205 = vadd.f32 %v66, %v204
    %206 = vdwg.mxu0
    %v207 = vld [vmem:[#allocation3] sm:$0xff]
    %v208 = vld [vmem:[#allocation3 + $0x8] sm:$0xff]
    %v209 = vld [vmem:[#allocation3 + $0x10] sm:$0xff]
    %v210 = vld [vmem:[#allocation3 + $0x18] sm:$0xff]
    %v211 = vld [vmem:[#allocation3 + $0x20] sm:$0xff]
    %v212 = vld [vmem:[#allocation3 + $0x28] sm:$0xff]
    %v213 = vld [vmem:[#allocation3 + $0x30] sm:$0xff]
    %v214 = vld [vmem:[#allocation3 + $0x38] sm:$0xff]
    %v215 = vld [vmem:[#allocation3 + $0x40] sm:$0xff]
    %v216 = vld [vmem:[#allocation3 + $0x48] sm:$0xff]
    %v217 = vld [vmem:[#allocation3 + $0x50] sm:$0xff]
    %v218 = vld [vmem:[#allocation3 + $0x58] sm:$0xff]
    %v219 = vld [vmem:[#allocation3 + $0x60] sm:$0xff]
    %v220 = vld [vmem:[#allocation3 + $0x68] sm:$0xff]
    %v221 = vld [vmem:[#allocation3 + $0x70] sm:$0xff]
    %v222 = vld [vmem:[#allocation3 + $0x78] sm:$0xff]
    %vm223 = vcmask 523264
    %v225 = vsel %vm223, 0.0, 0
    %227 = vmatprep.subr.mxu0 0.0
    %228 = vmatpush1.msra.mxu0 0.0
    %229 = vmatprep.subr.mxu0 0.0
    %230 = vmatpush1.msra.mxu0 0.0
    %231 = vmatprep.subr.mxu0 0.0
    %232 = vmatpush1.msra.mxu0 0.0
    %233 = vmatprep.subr.mxu0 0.0
    %234 = vmatpush1.msra.mxu0 0.0
    %235 = vmatprep.subr.mxu0 0.0
    %236 = vmatpush1.msra.mxu0 0.0
    %237 = vmatprep.subr.mxu0 0.0
    %238 = vmatpush1.msra.mxu0 0.0
    %239 = vmatprep.subr.mxu0 0.0
    %240 = vmatpush1.msra.mxu0 0.0
    %241 = vmatprep.subr.mxu0 0.0
    %242 = vmatpush1.msra.mxu0 0.0
    %243 = vmatprep.subr.mxu0 %v222
    %244 = vmatpush1.msra.mxu0 %v221
    %245 = vmatprep.subr.mxu0 %v220
    %246 = vmatpush1.msra.mxu0 %v219
    %247 = vmatprep.subr.mxu0 %v218
    %248 = vmatpush1.msra.mxu0 %v217
    %249 = vmatprep.subr.mxu0 %v216
    %250 = vmatpush1.msra.mxu0 %v215
    %251 = vmatprep.subr.mxu0 %v214
    %252 = vmatpush1.msra.mxu0 %v213
    %253 = vmatprep.subr.mxu0 %v212
    %254 = vmatpush1.msra.mxu0 %v211
    %255 = vmatprep.subr.mxu0 %v210
    %256 = vmatpush1.msra.mxu0 %v209
    %257 = vmatprep.subr.mxu0 %v208
    %258 = vmatpush1.msra.mxu0 %v207
    %259 = vmatprep.subr.mxu0 0.0
    %260 = vmatpush2.msra.mxu0 0.0
    %261 = vmatprep.subr.mxu0 0.0
    %262 = vmatpush2.msra.mxu0 0.0
    %263 = vmatprep.subr.mxu0 0.0
    %264 = vmatpush2.msra.mxu0 0.0
    %265 = vmatprep.subr.mxu0 0.0
    %266 = vmatpush2.msra.mxu0 0.0
    %267 = vmatprep.subr.mxu0 0.0
    %268 = vmatpush2.msra.mxu0 0.0
    %269 = vmatprep.subr.mxu0 0.0
    %270 = vmatpush2.msra.mxu0 0.0
    %271 = vmatprep.subr.mxu0 0.0
    %272 = vmatpush2.msra.mxu0 0.0
    %273 = vmatprep.subr.mxu0 0.0
    %274 = vmatpush2.msra.mxu0 0.0
    %275 = vmatprep.subr.mxu0 0.0
    %276 = vmatpush2.msra.mxu0 0.0
    %277 = vmatprep.subr.mxu0 0.0
    %278 = vmatpush2.msra.mxu0 0.0
    %279 = vmatprep.subr.mxu0 0.0
    %280 = vmatpush2.msra.mxu0 0.0
    %281 = vmatprep.subr.mxu0 0.0
    %282 = vmatpush2.msra.mxu0 0.0
    %283 = vmatprep.subr.mxu0 0.0
    %284 = vmatpush2.msra.mxu0 0.0
    %285 = vmatprep.subr.mxu0 0.0
    %286 = vmatpush2.msra.mxu0 0.0
    %287 = vmatprep.subr.mxu0 0.0
    %288 = vmatpush2.msra.mxu0 0.0
    %289 = vmatprep.subr.mxu0 0.0
    %290 = vmatpush2.msra.mxu0 0.0
    %291 = vmatprep.mubr.f32.mxu0 0.0
    %292 = vmatmul.mubr.f32.gmra.mxu0 %v225
    %v293 = vpop.f32.mrf.mxu0
    %v294 = vadd.f32 0.0, %v293
    %v295 = vpop.f32.mrf.mxu0
    %v296 = vadd.f32 0.0, %v295
    %297 = vdwg.mxu0
    %v298 = vadd.f32 %v161, %v294
    %v299 = vadd.f32 %v163, %v296
    %v300 = vsub.f32 0.0, %v298
    %v301 = vsub.f32 0.0, %v299
    %v302 = vmul.f32 %v300, 1.442695
    %v303 = vpow.pop %v302
    %v304 = vmul.f32 %v301, 1.442695
    %v305 = vpow.pop %v304
    %v306 = vadd.f32 %v303, 1.0
    %v307 = vadd.f32 %v305, 1.0
    %v308 = vrcp.pop %v306
    %v309 = vrcp.pop %v307
    %v310 = vtanh.pop %v299
    %v311 = vmul.f32 %v308, 0.0
    %313 = vrot.lane.b32.xlu0 %v310, 64
    %v314 = vpop.permute.xlu0 %313
    %v316 = vmul.f32 %v308, %v314
    %318 = vrot.lane.b32.xlu0 %v316, 64
    %v319 = vpop.permute.xlu0 %318
    %v321 = vadd.f32 %v311, %v319
    %v322 = vtanh.pop %v321
    %324 = vrot.lane.b32.xlu0 %v322, 64
    %v325 = vpop.permute.xlu0 %324
    %v327 = vmul.f32 %v309, %v325
    %vm328 = vcmask 261120
    %v329 = vsel %vm328, 1.0, 0.0
    %v330 = vlaneseq
    %v331 = vshrl.u32 %v330, 7
    %v332 = vsub.s32 0, %v331
    %v333 = vrot.slane %v329, %v332
    %v334 = vmul.f32 %v327, %v333
    %336 = vrot.lane.b32.xlu0 %v333, 64
    %v337 = vpop.permute.xlu0 %336
    %v339 = vmul.f32 %v321, %v337
    %v341 = vsel %vm223, %v334, 0
    %343 = vmatprep.subr.mxu0 0.0
    %344 = vmatpush1.msra.mxu0 0.0
    %345 = vmatprep.subr.mxu0 0.0
    %346 = vmatpush1.msra.mxu0 0.0
    %347 = vmatprep.subr.mxu0 0.0
    %348 = vmatpush1.msra.mxu0 0.0
    %349 = vmatprep.subr.mxu0 0.0
    %350 = vmatpush1.msra.mxu0 0.0
    %351 = vmatprep.subr.mxu0 0.0
    %352 = vmatpush1.msra.mxu0 0.0
    %353 = vmatprep.subr.mxu0 0.0
    %354 = vmatpush1.msra.mxu0 0.0
    %355 = vmatprep.subr.mxu0 0.0
    %356 = vmatpush1.msra.mxu0 0.0
    %357 = vmatprep.subr.mxu0 0.0
    %358 = vmatpush1.msra.mxu0 0.0
    %359 = vmatprep.subr.mxu0 %v222
    %360 = vmatpush1.msra.mxu0 %v221
    %361 = vmatprep.subr.mxu0 %v220
    %362 = vmatpush1.msra.mxu0 %v219
    %363 = vmatprep.subr.mxu0 %v218
    %364 = vmatpush1.msra.mxu0 %v217
    %365 = vmatprep.subr.mxu0 %v216
    %366 = vmatpush1.msra.mxu0 %v215
    %367 = vmatprep.subr.mxu0 %v214
    %368 = vmatpush1.msra.mxu0 %v213
    %369 = vmatprep.subr.mxu0 %v212
    %370 = vmatpush1.msra.mxu0 %v211
    %371 = vmatprep.subr.mxu0 %v210
    %372 = vmatpush1.msra.mxu0 %v209
    %373 = vmatprep.subr.mxu0 %v208
    %374 = vmatpush1.msra.mxu0 %v207
    %375 = vmatprep.subr.mxu0 0.0
    %376 = vmatpush2.msra.mxu0 0.0
    %377 = vmatprep.subr.mxu0 0.0
    %378 = vmatpush2.msra.mxu0 0.0
    %379 = vmatprep.subr.mxu0 0.0
    %380 = vmatpush2.msra.mxu0 0.0
    %381 = vmatprep.subr.mxu0 0.0
    %382 = vmatpush2.msra.mxu0 0.0
    %383 = vmatprep.subr.mxu0 0.0
    %384 = vmatpush2.msra.mxu0 0.0
    %385 = vmatprep.subr.mxu0 0.0
    %386 = vmatpush2.msra.mxu0 0.0
    %387 = vmatprep.subr.mxu0 0.0
    %388 = vmatpush2.msra.mxu0 0.0
    %389 = vmatprep.subr.mxu0 0.0
    %390 = vmatpush2.msra.mxu0 0.0
    %391 = vmatprep.subr.mxu0 0.0
    %392 = vmatpush2.msra.mxu0 0.0
    %393 = vmatprep.subr.mxu0 0.0
    %394 = vmatpush2.msra.mxu0 0.0
    %395 = vmatprep.subr.mxu0 0.0
    %396 = vmatpush2.msra.mxu0 0.0
    %397 = vmatprep.subr.mxu0 0.0
    %398 = vmatpush2.msra.mxu0 0.0
    %399 = vmatprep.subr.mxu0 0.0
    %400 = vmatpush2.msra.mxu0 0.0
    %401 = vmatprep.subr.mxu0 0.0
    %402 = vmatpush2.msra.mxu0 0.0
    %403 = vmatprep.subr.mxu0 0.0
    %404 = vmatpush2.msra.mxu0 0.0
    %405 = vmatprep.subr.mxu0 0.0
    %406 = vmatpush2.msra.mxu0 0.0
    %407 = vmatprep.mubr.f32.mxu0 0.0
    %408 = vmatmul.mubr.f32.gmra.mxu0 %v341
    %v409 = vpop.f32.mrf.mxu0
    %v410 = vadd.f32 0.0, %v409
    %v411 = vpop.f32.mrf.mxu0
    %v412 = vadd.f32 0.0, %v411
    %413 = vdwg.mxu0
    %v414 = vadd.f32 %v167, %v410
    %v415 = vadd.f32 %v169, %v412
    %v416 = vsub.f32 0.0, %v414
    %v417 = vsub.f32 0.0, %v415
    %v418 = vmul.f32 %v416, 1.442695
    %v419 = vpow.pop %v418
    %v420 = vmul.f32 %v417, 1.442695
    %v421 = vpow.pop %v420
    %v422 = vadd.f32 %v419, 1.0
    %v423 = vadd.f32 %v421, 1.0
    %v424 = vrcp.pop %v422
    %v425 = vrcp.pop %v423
    %v426 = vtanh.pop %v415
    %v427 = vmul.f32 %v424, %v339
    %429 = vrot.lane.b32.xlu0 %v426, 64
    %v430 = vpop.permute.xlu0 %429
    %v432 = vmul.f32 %v424, %v430
    %434 = vrot.lane.b32.xlu0 %v432, 64
    %v435 = vpop.permute.xlu0 %434
    %v437 = vadd.f32 %v427, %v435
    %v438 = vtanh.pop %v437
    %440 = vrot.lane.b32.xlu0 %v438, 64
    %v441 = vpop.permute.xlu0 %440
    %v443 = vmul.f32 %v425, %v441
    %v445 = vsel %vm223, %v443, 0
    %447 = vmatprep.subr.mxu0 0.0
    %448 = vmatpush1.msra.mxu0 0.0
    %449 = vmatprep.subr.mxu0 0.0
    %450 = vmatpush1.msra.mxu0 0.0
    %451 = vmatprep.subr.mxu0 0.0
    %452 = vmatpush1.msra.mxu0 0.0
    %453 = vmatprep.subr.mxu0 0.0
    %454 = vmatpush1.msra.mxu0 0.0
    %455 = vmatprep.subr.mxu0 0.0
    %456 = vmatpush1.msra.mxu0 0.0
    %457 = vmatprep.subr.mxu0 0.0
    %458 = vmatpush1.msra.mxu0 0.0
    %459 = vmatprep.subr.mxu0 0.0
    %460 = vmatpush1.msra.mxu0 0.0
    %461 = vmatprep.subr.mxu0 0.0
    %462 = vmatpush1.msra.mxu0 0.0
    %463 = vmatprep.subr.mxu0 %v222
    %464 = vmatpush1.msra.mxu0 %v221
    %465 = vmatprep.subr.mxu0 %v220
    %466 = vmatpush1.msra.mxu0 %v219
    %467 = vmatprep.subr.mxu0 %v218
    %468 = vmatpush1.msra.mxu0 %v217
    %469 = vmatprep.subr.mxu0 %v216
    %470 = vmatpush1.msra.mxu0 %v215
    %471 = vmatprep.subr.mxu0 %v214
    %472 = vmatpush1.msra.mxu0 %v213
    %473 = vmatprep.subr.mxu0 %v212
    %474 = vmatpush1.msra.mxu0 %v211
    %475 = vmatprep.subr.mxu0 %v210
    %476 = vmatpush1.msra.mxu0 %v209
    %477 = vmatprep.subr.mxu0 %v208
    %478 = vmatpush1.msra.mxu0 %v207
    %479 = vmatprep.subr.mxu0 0.0
    %480 = vmatpush2.msra.mxu0 0.0
    %481 = vmatprep.subr.mxu0 0.0
    %482 = vmatpush2.msra.mxu0 0.0
    %483 = vmatprep.subr.mxu0 0.0
    %484 = vmatpush2.msra.mxu0 0.0
    %485 = vmatprep.subr.mxu0 0.0
    %486 = vmatpush2.msra.mxu0 0.0
    %487 = vmatprep.subr.mxu0 0.0
    %488 = vmatpush2.msra.mxu0 0.0
    %489 = vmatprep.subr.mxu0 0.0
    %490 = vmatpush2.msra.mxu0 0.0
    %491 = vmatprep.subr.mxu0 0.0
    %492 = vmatpush2.msra.mxu0 0.0
    %493 = vmatprep.subr.mxu0 0.0
    %494 = vmatpush2.msra.mxu0 0.0
    %495 = vmatprep.subr.mxu0 0.0
    %496 = vmatpush2.msra.mxu0 0.0
    %497 = vmatprep.subr.mxu0 0.0
    %498 = vmatpush2.msra.mxu0 0.0
    %499 = vmatprep.subr.mxu0 0.0
    %500 = vmatpush2.msra.mxu0 0.0
    %501 = vmatprep.subr.mxu0 0.0
    %502 = vmatpush2.msra.mxu0 0.0
    %503 = vmatprep.subr.mxu0 0.0
    %504 = vmatpush2.msra.mxu0 0.0
    %505 = vmatprep.subr.mxu0 0.0
    %506 = vmatpush2.msra.mxu0 0.0
    %507 = vmatprep.subr.mxu0 0.0
    %508 = vmatpush2.msra.mxu0 0.0
    %509 = vmatprep.subr.mxu0 0.0
    %510 = vmatpush2.msra.mxu0 0.0
    %511 = vmatprep.mubr.f32.mxu0 0.0
    %512 = vmatmul.mubr.f32.gmra.mxu0 %v445
    %v513 = vpop.f32.mrf.mxu0
    %v514 = vadd.f32 0.0, %v513
    %v515 = vpop.f32.mrf.mxu0
    %v516 = vadd.f32 0.0, %v515
    %517 = vdwg.mxu0
    %v518 = vadd.f32 %v173, %v514
    %v519 = vadd.f32 %v175, %v516
    %v520 = vsub.f32 0.0, %v518
    %v521 = vsub.f32 0.0, %v519
    %v522 = vmul.f32 %v520, 1.442695
    %v523 = vpow.pop %v522
    %v524 = vmul.f32 %v521, 1.442695
    %v525 = vpow.pop %v524
    %v526 = vadd.f32 %v523, 1.0
    %v527 = vadd.f32 %v525, 1.0
    %v528 = vrcp.pop %v526
    %v529 = vrcp.pop %v527
    %v530 = vtanh.pop %v519
    %v531 = vmul.f32 %v528, %v437
    %533 = vrot.lane.b32.xlu0 %v530, 64
    %v534 = vpop.permute.xlu0 %533
    %v536 = vmul.f32 %v528, %v534
    %538 = vrot.lane.b32.xlu0 %v536, 64
    %v539 = vpop.permute.xlu0 %538
    %v541 = vadd.f32 %v531, %v539
    %v542 = vtanh.pop %v541
    %544 = vrot.lane.b32.xlu0 %v542, 64
    %v545 = vpop.permute.xlu0 %544
    %v547 = vmul.f32 %v529, %v545
    %v549 = vsel %vm223, %v547, 0
    %551 = vmatprep.subr.mxu0 0.0
    %552 = vmatpush1.msra.mxu0 0.0
    %553 = vmatprep.subr.mxu0 0.0
    %554 = vmatpush1.msra.mxu0 0.0
    %555 = vmatprep.subr.mxu0 0.0
    %556 = vmatpush1.msra.mxu0 0.0
    %557 = vmatprep.subr.mxu0 0.0
    %558 = vmatpush1.msra.mxu0 0.0
    %559 = vmatprep.subr.mxu0 0.0
    %560 = vmatpush1.msra.mxu0 0.0
    %561 = vmatprep.subr.mxu0 0.0
    %562 = vmatpush1.msra.mxu0 0.0
    %563 = vmatprep.subr.mxu0 0.0
    %564 = vmatpush1.msra.mxu0 0.0
    %565 = vmatprep.subr.mxu0 0.0
    %566 = vmatpush1.msra.mxu0 0.0
    %567 = vmatprep.subr.mxu0 %v222
    %568 = vmatpush1.msra.mxu0 %v221
    %569 = vmatprep.subr.mxu0 %v220
    %570 = vmatpush1.msra.mxu0 %v219
    %571 = vmatprep.subr.mxu0 %v218
    %572 = vmatpush1.msra.mxu0 %v217
    %573 = vmatprep.subr.mxu0 %v216
    %574 = vmatpush1.msra.mxu0 %v215
    %575 = vmatprep.subr.mxu0 %v214
    %576 = vmatpush1.msra.mxu0 %v213
    %577 = vmatprep.subr.mxu0 %v212
    %578 = vmatpush1.msra.mxu0 %v211
    %579 = vmatprep.subr.mxu0 %v210
    %580 = vmatpush1.msra.mxu0 %v209
    %581 = vmatprep.subr.mxu0 %v208
    %582 = vmatpush1.msra.mxu0 %v207
    %583 = vmatprep.subr.mxu0 0.0
    %584 = vmatpush2.msra.mxu0 0.0
    %585 = vmatprep.subr.mxu0 0.0
    %586 = vmatpush2.msra.mxu0 0.0
    %587 = vmatprep.subr.mxu0 0.0
    %588 = vmatpush2.msra.mxu0 0.0
    %589 = vmatprep.subr.mxu0 0.0
    %590 = vmatpush2.msra.mxu0 0.0
    %591 = vmatprep.subr.mxu0 0.0
    %592 = vmatpush2.msra.mxu0 0.0
    %593 = vmatprep.subr.mxu0 0.0
    %594 = vmatpush2.msra.mxu0 0.0
    %595 = vmatprep.subr.mxu0 0.0
    %596 = vmatpush2.msra.mxu0 0.0
    %597 = vmatprep.subr.mxu0 0.0
    %598 = vmatpush2.msra.mxu0 0.0
    %599 = vmatprep.subr.mxu0 0.0
    %600 = vmatpush2.msra.mxu0 0.0
    %601 = vmatprep.subr.mxu0 0.0
    %602 = vmatpush2.msra.mxu0 0.0
    %603 = vmatprep.subr.mxu0 0.0
    %604 = vmatpush2.msra.mxu0 0.0
    %605 = vmatprep.subr.mxu0 0.0
    %606 = vmatpush2.msra.mxu0 0.0
    %607 = vmatprep.subr.mxu0 0.0
    %608 = vmatpush2.msra.mxu0 0.0
    %609 = vmatprep.subr.mxu0 0.0
    %610 = vmatpush2.msra.mxu0 0.0
    %611 = vmatprep.subr.mxu0 0.0
    %612 = vmatpush2.msra.mxu0 0.0
    %613 = vmatprep.subr.mxu0 0.0
    %614 = vmatpush2.msra.mxu0 0.0
    %615 = vmatprep.mubr.f32.mxu0 0.0
    %616 = vmatmul.mubr.f32.gmra.mxu0 %v549
    %v617 = vpop.f32.mrf.mxu0
    %v618 = vadd.f32 0.0, %v617
    %v619 = vpop.f32.mrf.mxu0
    %v620 = vadd.f32 0.0, %v619
    %621 = vdwg.mxu0
    %v622 = vadd.f32 %v179, %v618
    %v623 = vadd.f32 %v181, %v620
    %v624 = vsub.f32 0.0, %v622
    %v625 = vsub.f32 0.0, %v623
    %v626 = vmul.f32 %v624, 1.442695
    %v627 = vpow.pop %v626
    %v628 = vmul.f32 %v625, 1.442695
    %v629 = vpow.pop %v628
    %v630 = vadd.f32 %v627, 1.0
    %v631 = vadd.f32 %v629, 1.0
    %v632 = vrcp.pop %v630
    %v633 = vrcp.pop %v631
    %v634 = vtanh.pop %v623
    %v635 = vmul.f32 %v632, %v541
    %637 = vrot.lane.b32.xlu0 %v634, 64
    %v638 = vpop.permute.xlu0 %637
    %v640 = vmul.f32 %v632, %v638
    %642 = vrot.lane.b32.xlu0 %v640, 64
    %v643 = vpop.permute.xlu0 %642
    %v645 = vadd.f32 %v635, %v643
    %v646 = vtanh.pop %v645
    %648 = vrot.lane.b32.xlu0 %v646, 64
    %v649 = vpop.permute.xlu0 %648
    %v651 = vmul.f32 %v633, %v649
    %v653 = vsel %vm223, %v651, 0
    %655 = vmatprep.subr.mxu0 0.0
    %656 = vmatpush1.msra.mxu0 0.0
    %657 = vmatprep.subr.mxu0 0.0
    %658 = vmatpush1.msra.mxu0 0.0
    %659 = vmatprep.subr.mxu0 0.0
    %660 = vmatpush1.msra.mxu0 0.0
    %661 = vmatprep.subr.mxu0 0.0
    %662 = vmatpush1.msra.mxu0 0.0
    %663 = vmatprep.subr.mxu0 0.0
    %664 = vmatpush1.msra.mxu0 0.0
    %665 = vmatprep.subr.mxu0 0.0
    %666 = vmatpush1.msra.mxu0 0.0
    %667 = vmatprep.subr.mxu0 0.0
    %668 = vmatpush1.msra.mxu0 0.0
    %669 = vmatprep.subr.mxu0 0.0
    %670 = vmatpush1.msra.mxu0 0.0
    %671 = vmatprep.subr.mxu0 %v222
    %672 = vmatpush1.msra.mxu0 %v221
    %673 = vmatprep.subr.mxu0 %v220
    %674 = vmatpush1.msra.mxu0 %v219
    %675 = vmatprep.subr.mxu0 %v218
    %676 = vmatpush1.msra.mxu0 %v217
    %677 = vmatprep.subr.mxu0 %v216
    %678 = vmatpush1.msra.mxu0 %v215
    %679 = vmatprep.subr.mxu0 %v214
    %680 = vmatpush1.msra.mxu0 %v213
    %681 = vmatprep.subr.mxu0 %v212
    %682 = vmatpush1.msra.mxu0 %v211
    %683 = vmatprep.subr.mxu0 %v210
    %684 = vmatpush1.msra.mxu0 %v209
    %685 = vmatprep.subr.mxu0 %v208
    %686 = vmatpush1.msra.mxu0 %v207
    %687 = vmatprep.subr.mxu0 0.0
    %688 = vmatpush2.msra.mxu0 0.0
    %689 = vmatprep.subr.mxu0 0.0
    %690 = vmatpush2.msra.mxu0 0.0
    %691 = vmatprep.subr.mxu0 0.0
    %692 = vmatpush2.msra.mxu0 0.0
    %693 = vmatprep.subr.mxu0 0.0
    %694 = vmatpush2.msra.mxu0 0.0
    %695 = vmatprep.subr.mxu0 0.0
    %696 = vmatpush2.msra.mxu0 0.0
    %697 = vmatprep.subr.mxu0 0.0
    %698 = vmatpush2.msra.mxu0 0.0
    %699 = vmatprep.subr.mxu0 0.0
    %700 = vmatpush2.msra.mxu0 0.0
    %701 = vmatprep.subr.mxu0 0.0
    %702 = vmatpush2.msra.mxu0 0.0
    %703 = vmatprep.subr.mxu0 0.0
    %704 = vmatpush2.msra.mxu0 0.0
    %705 = vmatprep.subr.mxu0 0.0
    %706 = vmatpush2.msra.mxu0 0.0
    %707 = vmatprep.subr.mxu0 0.0
    %708 = vmatpush2.msra.mxu0 0.0
    %709 = vmatprep.subr.mxu0 0.0
    %710 = vmatpush2.msra.mxu0 0.0
    %711 = vmatprep.subr.mxu0 0.0
    %712 = vmatpush2.msra.mxu0 0.0
    %713 = vmatprep.subr.mxu0 0.0
    %714 = vmatpush2.msra.mxu0 0.0
    %715 = vmatprep.subr.mxu0 0.0
    %716 = vmatpush2.msra.mxu0 0.0
    %717 = vmatprep.subr.mxu0 0.0
    %718 = vmatpush2.msra.mxu0 0.0
    %719 = vmatprep.mubr.f32.mxu0 0.0
    %720 = vmatmul.mubr.f32.gmra.mxu0 %v653
    %v721 = vpop.f32.mrf.mxu0
    %v722 = vadd.f32 0.0, %v721
    %v723 = vpop.f32.mrf.mxu0
    %v724 = vadd.f32 0.0, %v723
    %725 = vdwg.mxu0
    %v726 = vadd.f32 %v185, %v722
    %v727 = vadd.f32 %v187, %v724
    %v728 = vsub.f32 0.0, %v726
    %v729 = vsub.f32 0.0, %v727
    %v730 = vmul.f32 %v728, 1.442695
    %v731 = vpow.pop %v730
    %v732 = vmul.f32 %v729, 1.442695
    %v733 = vpow.pop %v732
    %v734 = vadd.f32 %v731, 1.0
    %v735 = vadd.f32 %v733, 1.0
    %v736 = vrcp.pop %v734
    %v737 = vrcp.pop %v735
    %v738 = vtanh.pop %v727
    %v739 = vmul.f32 %v736, %v645
    %741 = vrot.lane.b32.xlu0 %v738, 64
    %v742 = vpop.permute.xlu0 %741
    %v744 = vmul.f32 %v736, %v742
    %746 = vrot.lane.b32.xlu0 %v744, 64
    %v747 = vpop.permute.xlu0 %746
    %v749 = vadd.f32 %v739, %v747
    %v750 = vtanh.pop %v749
    %752 = vrot.lane.b32.xlu0 %v750, 64
    %v753 = vpop.permute.xlu0 %752
    %v755 = vmul.f32 %v737, %v753
    %v757 = vsel %vm223, %v755, 0
    %759 = vmatprep.subr.mxu0 0.0
    %760 = vmatpush1.msra.mxu0 0.0
    %761 = vmatprep.subr.mxu0 0.0
    %762 = vmatpush1.msra.mxu0 0.0
    %763 = vmatprep.subr.mxu0 0.0
    %764 = vmatpush1.msra.mxu0 0.0
    %765 = vmatprep.subr.mxu0 0.0
    %766 = vmatpush1.msra.mxu0 0.0
    %767 = vmatprep.subr.mxu0 0.0
    %768 = vmatpush1.msra.mxu0 0.0
    %769 = vmatprep.subr.mxu0 0.0
    %770 = vmatpush1.msra.mxu0 0.0
    %771 = vmatprep.subr.mxu0 0.0
    %772 = vmatpush1.msra.mxu0 0.0
    %773 = vmatprep.subr.mxu0 0.0
    %774 = vmatpush1.msra.mxu0 0.0
    %775 = vmatprep.subr.mxu0 %v222
    %776 = vmatpush1.msra.mxu0 %v221
    %777 = vmatprep.subr.mxu0 %v220
    %778 = vmatpush1.msra.mxu0 %v219
    %779 = vmatprep.subr.mxu0 %v218
    %780 = vmatpush1.msra.mxu0 %v217
    %781 = vmatprep.subr.mxu0 %v216
    %782 = vmatpush1.msra.mxu0 %v215
    %783 = vmatprep.subr.mxu0 %v214
    %784 = vmatpush1.msra.mxu0 %v213
    %785 = vmatprep.subr.mxu0 %v212
    %786 = vmatpush1.msra.mxu0 %v211
    %787 = vmatprep.subr.mxu0 %v210
    %788 = vmatpush1.msra.mxu0 %v209
    %789 = vmatprep.subr.mxu0 %v208
    %790 = vmatpush1.msra.mxu0 %v207
    %791 = vmatprep.subr.mxu0 0.0
    %792 = vmatpush2.msra.mxu0 0.0
    %793 = vmatprep.subr.mxu0 0.0
    %794 = vmatpush2.msra.mxu0 0.0
    %795 = vmatprep.subr.mxu0 0.0
    %796 = vmatpush2.msra.mxu0 0.0
    %797 = vmatprep.subr.mxu0 0.0
    %798 = vmatpush2.msra.mxu0 0.0
    %799 = vmatprep.subr.mxu0 0.0
    %800 = vmatpush2.msra.mxu0 0.0
    %801 = vmatprep.subr.mxu0 0.0
    %802 = vmatpush2.msra.mxu0 0.0
    %803 = vmatprep.subr.mxu0 0.0
    %804 = vmatpush2.msra.mxu0 0.0
    %805 = vmatprep.subr.mxu0 0.0
    %806 = vmatpush2.msra.mxu0 0.0
    %807 = vmatprep.subr.mxu0 0.0
    %808 = vmatpush2.msra.mxu0 0.0
    %809 = vmatprep.subr.mxu0 0.0
    %810 = vmatpush2.msra.mxu0 0.0
    %811 = vmatprep.subr.mxu0 0.0
    %812 = vmatpush2.msra.mxu0 0.0
    %813 = vmatprep.subr.mxu0 0.0
    %814 = vmatpush2.msra.mxu0 0.0
    %815 = vmatprep.subr.mxu0 0.0
    %816 = vmatpush2.msra.mxu0 0.0
    %817 = vmatprep.subr.mxu0 0.0
    %818 = vmatpush2.msra.mxu0 0.0
    %819 = vmatprep.subr.mxu0 0.0
    %820 = vmatpush2.msra.mxu0 0.0
    %821 = vmatprep.subr.mxu0 0.0
    %822 = vmatpush2.msra.mxu0 0.0
    %823 = vmatprep.mubr.f32.mxu0 0.0
    %824 = vmatmul.mubr.f32.gmra.mxu0 %v757
    %v825 = vpop.f32.mrf.mxu0
    %v826 = vadd.f32 0.0, %v825
    %v827 = vpop.f32.mrf.mxu0
    %v828 = vadd.f32 0.0, %v827
    %829 = vdwg.mxu0
    %v830 = vadd.f32 %v191, %v826
    %v831 = vadd.f32 %v193, %v828
    %v832 = vsub.f32 0.0, %v830
    %v833 = vsub.f32 0.0, %v831
    %v834 = vmul.f32 %v832, 1.442695
    %v835 = vpow.pop %v834
    %v836 = vmul.f32 %v833, 1.442695
    %v837 = vpow.pop %v836
    %v838 = vadd.f32 %v835, 1.0
    %v839 = vadd.f32 %v837, 1.0
    %v840 = vrcp.pop %v838
    %v841 = vrcp.pop %v839
    %v842 = vtanh.pop %v831
    %v843 = vmul.f32 %v840, %v749
    %845 = vrot.lane.b32.xlu0 %v842, 64
    %v846 = vpop.permute.xlu0 %845
    %v848 = vmul.f32 %v840, %v846
    %850 = vrot.lane.b32.xlu0 %v848, 64
    %v851 = vpop.permute.xlu0 %850
    %v853 = vadd.f32 %v843, %v851
    %v854 = vtanh.pop %v853
    %856 = vrot.lane.b32.xlu0 %v854, 64
    %v857 = vpop.permute.xlu0 %856
    %v859 = vmul.f32 %v841, %v857
    %v861 = vsel %vm223, %v859, 0
    %863 = vmatprep.subr.mxu0 0.0
    %864 = vmatpush1.msra.mxu0 0.0
    %865 = vmatprep.subr.mxu0 0.0
    %866 = vmatpush1.msra.mxu0 0.0
    %867 = vmatprep.subr.mxu0 0.0
    %868 = vmatpush1.msra.mxu0 0.0
    %869 = vmatprep.subr.mxu0 0.0
    %870 = vmatpush1.msra.mxu0 0.0
    %871 = vmatprep.subr.mxu0 0.0
    %872 = vmatpush1.msra.mxu0 0.0
    %873 = vmatprep.subr.mxu0 0.0
    %874 = vmatpush1.msra.mxu0 0.0
    %875 = vmatprep.subr.mxu0 0.0
    %876 = vmatpush1.msra.mxu0 0.0
    %877 = vmatprep.subr.mxu0 0.0
    %878 = vmatpush1.msra.mxu0 0.0
    %879 = vmatprep.subr.mxu0 %v222
    %880 = vmatpush1.msra.mxu0 %v221
    %881 = vmatprep.subr.mxu0 %v220
    %882 = vmatpush1.msra.mxu0 %v219
    %883 = vmatprep.subr.mxu0 %v218
    %884 = vmatpush1.msra.mxu0 %v217
    %885 = vmatprep.subr.mxu0 %v216
    %886 = vmatpush1.msra.mxu0 %v215
    %887 = vmatprep.subr.mxu0 %v214
    %888 = vmatpush1.msra.mxu0 %v213
    %889 = vmatprep.subr.mxu0 %v212
    %890 = vmatpush1.msra.mxu0 %v211
    %891 = vmatprep.subr.mxu0 %v210
    %892 = vmatpush1.msra.mxu0 %v209
    %893 = vmatprep.subr.mxu0 %v208
    %894 = vmatpush1.msra.mxu0 %v207
    %895 = vmatprep.subr.mxu0 0.0
    %896 = vmatpush2.msra.mxu0 0.0
    %897 = vmatprep.subr.mxu0 0.0
    %898 = vmatpush2.msra.mxu0 0.0
    %899 = vmatprep.subr.mxu0 0.0
    %900 = vmatpush2.msra.mxu0 0.0
    %901 = vmatprep.subr.mxu0 0.0
    %902 = vmatpush2.msra.mxu0 0.0
    %903 = vmatprep.subr.mxu0 0.0
    %904 = vmatpush2.msra.mxu0 0.0
    %905 = vmatprep.subr.mxu0 0.0
    %906 = vmatpush2.msra.mxu0 0.0
    %907 = vmatprep.subr.mxu0 0.0
    %908 = vmatpush2.msra.mxu0 0.0
    %909 = vmatprep.subr.mxu0 0.0
    %910 = vmatpush2.msra.mxu0 0.0
    %911 = vmatprep.subr.mxu0 0.0
    %912 = vmatpush2.msra.mxu0 0.0
    %913 = vmatprep.subr.mxu0 0.0
    %914 = vmatpush2.msra.mxu0 0.0
    %915 = vmatprep.subr.mxu0 0.0
    %916 = vmatpush2.msra.mxu0 0.0
    %917 = vmatprep.subr.mxu0 0.0
    %918 = vmatpush2.msra.mxu0 0.0
    %919 = vmatprep.subr.mxu0 0.0
    %920 = vmatpush2.msra.mxu0 0.0
    %921 = vmatprep.subr.mxu0 0.0
    %922 = vmatpush2.msra.mxu0 0.0
    %923 = vmatprep.subr.mxu0 0.0
    %924 = vmatpush2.msra.mxu0 0.0
    %925 = vmatprep.subr.mxu0 0.0
    %926 = vmatpush2.msra.mxu0 0.0
    %927 = vmatprep.mubr.f32.mxu0 0.0
    %928 = vmatmul.mubr.f32.gmra.mxu0 %v861
    %v929 = vpop.f32.mrf.mxu0
    %v930 = vadd.f32 0.0, %v929
    %v931 = vpop.f32.mrf.mxu0
    %v932 = vadd.f32 0.0, %v931
    %933 = vdwg.mxu0
    %v934 = vadd.f32 %v197, %v930
    %v935 = vadd.f32 %v199, %v932
    %v936 = vsub.f32 0.0, %v934
    %v937 = vsub.f32 0.0, %v935
    %v938 = vmul.f32 %v936, 1.442695
    %v939 = vpow.pop %v938
    %v940 = vmul.f32 %v937, 1.442695
    %v941 = vpow.pop %v940
    %v942 = vadd.f32 %v939, 1.0
    %v943 = vadd.f32 %v941, 1.0
    %v944 = vrcp.pop %v942
    %v945 = vrcp.pop %v943
    %v946 = vtanh.pop %v935
    %v947 = vmul.f32 %v944, %v853
    %949 = vrot.lane.b32.xlu0 %v946, 64
    %v950 = vpop.permute.xlu0 %949
    %v952 = vmul.f32 %v944, %v950
    %954 = vrot.lane.b32.xlu0 %v952, 64
    %v955 = vpop.permute.xlu0 %954
    %v957 = vadd.f32 %v947, %v955
    %v958 = vtanh.pop %v957
    %960 = vrot.lane.b32.xlu0 %v958, 64
    %v961 = vpop.permute.xlu0 %960
    %v963 = vmul.f32 %v945, %v961
    %v965 = vsel %vm223, %v963, 0
    %967 = vmatprep.subr.mxu0 0.0
    %968 = vmatpush1.msra.mxu0 0.0
    %969 = vmatprep.subr.mxu0 0.0
    %970 = vmatpush1.msra.mxu0 0.0
    %971 = vmatprep.subr.mxu0 0.0
    %972 = vmatpush1.msra.mxu0 0.0
    %973 = vmatprep.subr.mxu0 0.0
    %974 = vmatpush1.msra.mxu0 0.0
    %975 = vmatprep.subr.mxu0 0.0
    %976 = vmatpush1.msra.mxu0 0.0
    %977 = vmatprep.subr.mxu0 0.0
    %978 = vmatpush1.msra.mxu0 0.0
    %979 = vmatprep.subr.mxu0 0.0
    %980 = vmatpush1.msra.mxu0 0.0
    %981 = vmatprep.subr.mxu0 0.0
    %982 = vmatpush1.msra.mxu0 0.0
    %983 = vmatprep.subr.mxu0 %v222
    %984 = vmatpush1.msra.mxu0 %v221
    %985 = vmatprep.subr.mxu0 %v220
    %986 = vmatpush1.msra.mxu0 %v219
    %987 = vmatprep.subr.mxu0 %v218
    %988 = vmatpush1.msra.mxu0 %v217
    %989 = vmatprep.subr.mxu0 %v216
    %990 = vmatpush1.msra.mxu0 %v215
    %991 = vmatprep.subr.mxu0 %v214
    %992 = vmatpush1.msra.mxu0 %v213
    %993 = vmatprep.subr.mxu0 %v212
    %994 = vmatpush1.msra.mxu0 %v211
    %995 = vmatprep.subr.mxu0 %v210
    %996 = vmatpush1.msra.mxu0 %v209
    %997 = vmatprep.subr.mxu0 %v208
    %998 = vmatpush1.msra.mxu0 %v207
    %999 = vmatprep.subr.mxu0 0.0
    %1000 = vmatpush2.msra.mxu0 0.0
    %1001 = vmatprep.subr.mxu0 0.0
    %1002 = vmatpush2.msra.mxu0 0.0
    %1003 = vmatprep.subr.mxu0 0.0
    %1004 = vmatpush2.msra.mxu0 0.0
    %1005 = vmatprep.subr.mxu0 0.0
    %1006 = vmatpush2.msra.mxu0 0.0
    %1007 = vmatprep.subr.mxu0 0.0
    %1008 = vmatpush2.msra.mxu0 0.0
    %1009 = vmatprep.subr.mxu0 0.0
    %1010 = vmatpush2.msra.mxu0 0.0
    %1011 = vmatprep.subr.mxu0 0.0
    %1012 = vmatpush2.msra.mxu0 0.0
    %1013 = vmatprep.subr.mxu0 0.0
    %1014 = vmatpush2.msra.mxu0 0.0
    %1015 = vmatprep.subr.mxu0 0.0
    %1016 = vmatpush2.msra.mxu0 0.0
    %1017 = vmatprep.subr.mxu0 0.0
    %1018 = vmatpush2.msra.mxu0 0.0
    %1019 = vmatprep.subr.mxu0 0.0
    %1020 = vmatpush2.msra.mxu0 0.0
    %1021 = vmatprep.subr.mxu0 0.0
    %1022 = vmatpush2.msra.mxu0 0.0
    %1023 = vmatprep.subr.mxu0 0.0
    %1024 = vmatpush2.msra.mxu0 0.0
    %1025 = vmatprep.subr.mxu0 0.0
    %1026 = vmatpush2.msra.mxu0 0.0
    %1027 = vmatprep.subr.mxu0 0.0
    %1028 = vmatpush2.msra.mxu0 0.0
    %1029 = vmatprep.subr.mxu0 0.0
    %1030 = vmatpush2.msra.mxu0 0.0
    %1031 = vmatprep.mubr.f32.mxu0 0.0
    %1032 = vmatmul.mubr.f32.gmra.mxu0 %v965
    %v1033 = vpop.f32.mrf.mxu0
    %v1034 = vadd.f32 0.0, %v1033
    %v1035 = vpop.f32.mrf.mxu0
    %v1036 = vadd.f32 0.0, %v1035
    %1037 = vdwg.mxu0
    %v1038 = vadd.f32 %v203, %v1034
    %v1039 = vadd.f32 %v205, %v1036
    %v1040 = vsub.f32 0.0, %v1038
    %v1041 = vsub.f32 0.0, %v1039
    %v1042 = vmul.f32 %v1040, 1.442695
    %v1043 = vpow.pop %v1042
    %v1044 = vmul.f32 %v1041, 1.442695
    %v1045 = vpow.pop %v1044
    %v1046 = vadd.f32 %v1043, 1.0
    %v1047 = vadd.f32 %v1045, 1.0
    %v1048 = vrcp.pop %v1046
    %v1049 = vrcp.pop %v1047
    %v1050 = vtanh.pop %v1039
    %v1051 = vmul.f32 %v1048, %v957
    %1053 = vrot.lane.b32.xlu0 %v1050, 64
    %v1054 = vpop.permute.xlu0 %1053
    %v1056 = vmul.f32 %v1048, %v1054
    %1058 = vrot.lane.b32.xlu0 %v1056, 64
    %v1059 = vpop.permute.xlu0 %1058
    %v1061 = vadd.f32 %v1051, %v1059
    %v1062 = vtanh.pop %v1061
    %1064 = vrot.lane.b32.xlu0 %v1062, 64
    %v1065 = vpop.permute.xlu0 %1064
    %v1067 = vmul.f32 %v1049, %v1065
    %v1069 = vsel %vm223, %v1067, 0
    %1071 = vmatprep.subr.mxu0 0.0
    %1072 = vmatpush1.msra.mxu0 0.0
    %1073 = vmatprep.subr.mxu0 0.0
    %1074 = vmatpush1.msra.mxu0 0.0
    %1075 = vmatprep.subr.mxu0 0.0
    %1076 = vmatpush1.msra.mxu0 0.0
    %1077 = vmatprep.subr.mxu0 0.0
    %1078 = vmatpush1.msra.mxu0 0.0
    %1079 = vmatprep.subr.mxu0 0.0
    %1080 = vmatpush1.msra.mxu0 0.0
    %1081 = vmatprep.subr.mxu0 0.0
    %1082 = vmatpush1.msra.mxu0 0.0
    %1083 = vmatprep.subr.mxu0 0.0
    %1084 = vmatpush1.msra.mxu0 0.0
    %1085 = vmatprep.subr.mxu0 0.0
    %1086 = vmatpush1.msra.mxu0 0.0
    %1087 = vmatprep.subr.mxu0 %v222
    %1088 = vmatpush1.msra.mxu0 %v221
    %1089 = vmatprep.subr.mxu0 %v220
    %1090 = vmatpush1.msra.mxu0 %v219
    %1091 = vmatprep.subr.mxu0 %v218
    %1092 = vmatpush1.msra.mxu0 %v217
    %1093 = vmatprep.subr.mxu0 %v216
    %1094 = vmatpush1.msra.mxu0 %v215
    %1095 = vmatprep.subr.mxu0 %v214
    %1096 = vmatpush1.msra.mxu0 %v213
    %1097 = vmatprep.subr.mxu0 %v212
    %1098 = vmatpush1.msra.mxu0 %v211
    %1099 = vmatprep.subr.mxu0 %v210
    %1100 = vmatpush1.msra.mxu0 %v209
    %1101 = vmatprep.subr.mxu0 %v208
    %1102 = vmatpush1.msra.mxu0 %v207
    %1103 = vmatprep.subr.mxu0 0.0
    %1104 = vmatpush2.msra.mxu0 0.0
    %1105 = vmatprep.subr.mxu0 0.0
    %1106 = vmatpush2.msra.mxu0 0.0
    %1107 = vmatprep.subr.mxu0 0.0
    %1108 = vmatpush2.msra.mxu0 0.0
    %1109 = vmatprep.subr.mxu0 0.0
    %1110 = vmatpush2.msra.mxu0 0.0
    %1111 = vmatprep.subr.mxu0 0.0
    %1112 = vmatpush2.msra.mxu0 0.0
    %1113 = vmatprep.subr.mxu0 0.0
    %1114 = vmatpush2.msra.mxu0 0.0
    %1115 = vmatprep.subr.mxu0 0.0
    %1116 = vmatpush2.msra.mxu0 0.0
    %1117 = vmatprep.subr.mxu0 0.0
    %1118 = vmatpush2.msra.mxu0 0.0
    %1119 = vmatprep.subr.mxu0 0.0
    %1120 = vmatpush2.msra.mxu0 0.0
    %1121 = vmatprep.subr.mxu0 0.0
    %1122 = vmatpush2.msra.mxu0 0.0
    %1123 = vmatprep.subr.mxu0 0.0
    %1124 = vmatpush2.msra.mxu0 0.0
    %1125 = vmatprep.subr.mxu0 0.0
    %1126 = vmatpush2.msra.mxu0 0.0
    %1127 = vmatprep.subr.mxu0 0.0
    %1128 = vmatpush2.msra.mxu0 0.0
    %1129 = vmatprep.subr.mxu0 0.0
    %1130 = vmatpush2.msra.mxu0 0.0
    %1131 = vmatprep.subr.mxu0 0.0
    %1132 = vmatpush2.msra.mxu0 0.0
    %1133 = vmatprep.subr.mxu0 0.0
    %1134 = vmatpush2.msra.mxu0 0.0
    %1135 = vmatprep.mubr.f32.mxu0 0.0
    %1136 = vmatmul.mubr.f32.gmra.mxu0 %v1069
    %v1137 = vpop.f32.mrf.mxu0
    %v1138 = vadd.f32 0.0, %v1137
    %v1139 = vpop.f32.mrf.mxu0
    %v1140 = vadd.f32 0.0, %v1139
    %1141 = vdwg.mxu0
    %v1142 = vadd.f32 %v62, %v1138
    %v1143 = vadd.f32 %v66, %v1140
    %v1144 = vsub.f32 0.0, %v1142
    %v1145 = vsub.f32 0.0, %v1143
    %v1146 = vmul.f32 %v1144, 1.442695
    %v1147 = vpow.pop %v1146
    %v1148 = vmul.f32 %v1145, 1.442695
    %v1149 = vpow.pop %v1148
    %v1150 = vadd.f32 %v1147, 1.0
    %v1151 = vadd.f32 %v1149, 1.0
    %v1152 = vrcp.pop %v1150
    %v1153 = vrcp.pop %v1151
    %v1154 = vtanh.pop %v1143
    %v1155 = vmul.f32 %v1152, %v1061
    %1157 = vrot.lane.b32.xlu0 %v1154, 64
    %v1158 = vpop.permute.xlu0 %1157
    %v1160 = vmul.f32 %v1152, %v1158
    %1162 = vrot.lane.b32.xlu0 %v1160, 64
    %v1163 = vpop.permute.xlu0 %1162
    %v1165 = vadd.f32 %v1155, %v1163
    %v1166 = vtanh.pop %v1165
    %1168 = vrot.lane.b32.xlu0 %v1166, 64
    %v1169 = vpop.permute.xlu0 %1168
    %v1171 = vmul.f32 %v1153, %v1169
    %v1172 = vld [vmem:[%s4] sm:$0xff]
    %v1173 = vld [vmem:[%s4 + $0x8] sm:$0xff]
    %v1174 = vld [vmem:[%s4 + $0x10] sm:$0xff]
    %v1175 = vld [vmem:[%s4 + $0x18] sm:$0xff]
    %v1176 = vld [vmem:[%s5] sm:$0x1]
    %v1178 = vlaneseq
    %v1179 = vshrl.u32 %v1178, 7
    %v1180 = vsub.s32 0, %v1179
    %v1181 = vrot.slane %v1176, %v1180
    %1184 = vrot.lane.b32.xlu0 %v1171, 96
    %v1185 = vpop.permute.xlu0 %1184
    %v1186 = vsel %vm328, %v1185, 0
    %1188 = vmatprep.subr.mxu0 0.0
    %1189 = vmatpush1.msra.mxu0 0.0
    %1190 = vmatprep.subr.mxu0 0.0
    %1191 = vmatpush1.msra.mxu0 0.0
    %1192 = vmatprep.subr.mxu0 0.0
    %1193 = vmatpush1.msra.mxu0 0.0
    %1194 = vmatprep.subr.mxu0 0.0
    %1195 = vmatpush1.msra.mxu0 0.0
    %1196 = vmatprep.subr.mxu0 0.0
    %1197 = vmatpush1.msra.mxu0 0.0
    %1198 = vmatprep.subr.mxu0 0.0
    %1199 = vmatpush1.msra.mxu0 0.0
    %1200 = vmatprep.subr.mxu0 0.0
    %1201 = vmatpush1.msra.mxu0 0.0
    %1202 = vmatprep.subr.mxu0 0.0
    %1203 = vmatpush1.msra.mxu0 0.0
    %1204 = vmatprep.subr.mxu0 0.0
    %1205 = vmatpush1.msra.mxu0 0.0
    %1206 = vmatprep.subr.mxu0 0.0
    %1207 = vmatpush1.msra.mxu0 0.0
    %1208 = vmatprep.subr.mxu0 0.0
    %1209 = vmatpush1.msra.mxu0 0.0
    %1210 = vmatprep.subr.mxu0 0.0
    %1211 = vmatpush1.msra.mxu0 0.0
    %1212 = vmatprep.subr.mxu0 0.0
    %1213 = vmatpush1.msra.mxu0 %v1175
    %1214 = vmatprep.subr.mxu0 0.0
    %1215 = vmatpush1.msra.mxu0 %v1174
    %1216 = vmatprep.subr.mxu0 0.0
    %1217 = vmatpush1.msra.mxu0 %v1173
    %1218 = vmatprep.subr.mxu0 0.0
    %1219 = vmatpush1.msra.mxu0 %v1172
    %1220 = vmatprep.subr.mxu0 0.0
    %1221 = vmatpush2.msra.mxu0 0.0
    %1222 = vmatprep.subr.mxu0 0.0
    %1223 = vmatpush2.msra.mxu0 0.0
    %1224 = vmatprep.subr.mxu0 0.0
    %1225 = vmatpush2.msra.mxu0 0.0
    %1226 = vmatprep.subr.mxu0 0.0
    %1227 = vmatpush2.msra.mxu0 0.0
    %1228 = vmatprep.subr.mxu0 0.0
    %1229 = vmatpush2.msra.mxu0 0.0
    %1230 = vmatprep.subr.mxu0 0.0
    %1231 = vmatpush2.msra.mxu0 0.0
    %1232 = vmatprep.subr.mxu0 0.0
    %1233 = vmatpush2.msra.mxu0 0.0
    %1234 = vmatprep.subr.mxu0 0.0
    %1235 = vmatpush2.msra.mxu0 0.0
    %1236 = vmatprep.subr.mxu0 0.0
    %1237 = vmatpush2.msra.mxu0 0.0
    %1238 = vmatprep.subr.mxu0 0.0
    %1239 = vmatpush2.msra.mxu0 0.0
    %1240 = vmatprep.subr.mxu0 0.0
    %1241 = vmatpush2.msra.mxu0 0.0
    %1242 = vmatprep.subr.mxu0 0.0
    %1243 = vmatpush2.msra.mxu0 0.0
    %1244 = vmatprep.subr.mxu0 0.0
    %1245 = vmatpush2.msra.mxu0 0.0
    %1246 = vmatprep.subr.mxu0 0.0
    %1247 = vmatpush2.msra.mxu0 0.0
    %1248 = vmatprep.subr.mxu0 0.0
    %1249 = vmatpush2.msra.mxu0 0.0
    %1250 = vmatprep.subr.mxu0 0.0
    %1251 = vmatpush2.msra.mxu0 0.0
    %1252 = vmatprep.mubr.f32.mxu0 0.0
    %1253 = vmatmul.mubr.f32.gmra.mxu0 %v1186
    %v1254 = vpop.f32.mrf.mxu0
    %v1255 = vadd.f32 %v1181, %v1254
    %v1256 = vpop.f32.mrf.mxu0
    %1257 = vdwg.mxu0
    %v1258 = vmax.f32 %v1255, 0.0
    %v1259 = vld [vmem:[%s6] sm:$0x1]
    %v1261 = vlaneseq
    %v1262 = vshrl.u32 %v1261, 7
    %v1263 = vsub.s32 0, %v1262
    %v1264 = vrot.slane %v1259, %v1263
    %v1266 = vmul.f32 %v1258, %v1264
    %v1267 = vsel %vm328, %v1266, 0.0
    %1268 = vadd.xlane.f32.xlu0 %v1267
    %v1269 = vpop.xlane.xlu0 %1268
    %v1270 = vld [vmem:[#allocation2] sm:$0x1]
    %v1272 = vlaneseq
    %v1273 = vshrl.u32 %v1272, 7
    %v1274 = vsub.s32 0, %v1273
    %v1275 = vrot.slane %v1270, %v1274
    %v1277 = vadd.f32 %v1269, %v1275
    %vm1278 = vcmask 7168
    %1279 = vst.msk [vmem:[%s8] sm:$0xff] %vm1278, %v1277
    // Predicated region
    $region38: #{tpu_custom_call.1} parent=1 // pred_check
      _
    $region39: #{tpu_custom_call.1} parent=1 // pred_check_branch
      %1281 = sbr.rel (0) target = $region41
    $region40: #{tpu_custom_call.1} parent=1 // pred_region
      _
    $region41: #{tpu_custom_call.1} parent=1 // pred_fallthru
      _
    // Predicated region
    $region42: #{tpu_custom_call.1} parent=1 // pred_check
      _
    $region43: #{tpu_custom_call.1} parent=1 // pred_check_branch
      %1283 = sbr.rel (0) target = $region45
    $region44: #{tpu_custom_call.1} parent=1 // pred_region
      _
    $region45: #{tpu_custom_call.1} parent=1 // pred_fallthru
      _
    %1284 = vsyncpa [#allocation4], 1

</llo_original>
